<compile_context>
chip_gen: v5e
topology: v5e:2x2
jax: 0.10.0
libtpu: 0.0.40
codegen_flags: <defaults>
</compile_context>

<pallas_src>
import functools

import jax
import jax.numpy as jnp
import numpy as np
from jax.experimental import pallas as pl
from jax.experimental.pallas import tpu as pltpu


# -----------------------------------------------------------------------------
# exact (erf-based) GELU, matching torch's default.  erf via Abramowitz &
# Stegun 7.1.26 (|abs err| ~1.5e-7); the division runs on the EUP.
# -----------------------------------------------------------------------------
def _gelu(z):
    a1, a2, a3, a4, a5 = (0.254829592, -0.284496736, 1.421413741,
                          -1.453152027, 1.061405429)
    p = 0.3275911
    za = jnp.abs(z) * 0.7071067811865476              # |z| / sqrt(2)
    t = pl.reciprocal(1.0 + p * za, approx=True)      # EUP slot (otherwise idle)
    poly = t * (a1 + t * (a2 + t * (a3 + t * (a4 + t * a5))))
    erf_abs = 1.0 - poly * jnp.exp(-za * za)
    erf = jnp.where(z >= 0.0, erf_abs, -erf_abs)
    return 0.5 * z * (1.0 + erf)


# -----------------------------------------------------------------------------
# fused Down kernel: one grid step == one sample
# -----------------------------------------------------------------------------
def _down_kernel(x_ref, t_ref, sel_ref, m_ref,
                 w1_ref, g1_ref, b1_ref,
                 w2_ref, g2_ref, b2_ref,
                 w3_ref, g3_ref, b3_ref,
                 w4_ref, g4_ref, b4_ref,
                 we_ref, be_ref,
                 o_ref,
                 *, H, W, Cin, Cout, Cp, Cop, eps=1e-5):
    """Per-sample fused MaxPool + DoubleConv(res) + DoubleConv + time-emb.

    x_ref  : (1, Cin, H*W)   raw input, channels-major (flattened NCHW)
    t_ref  : (1, E, 1)       time-embedding column
    sel_ref: (H*W, S)        0/1 lane-compaction matrix for the 2x2 pool
    m_ref  : (9, S)          per-tap conv validity masks (zero outside image)
    w*_ref : (coP, 9*ciP)    im2col conv weights, channel-padded to mult. of 8
    g*/b*  : (cP, 1)         GroupNorm affine (padded rows are zero)
    we/be  : (Cop, E)/(Cop,1) emb_layer Linear (transposed, padded)
    o_ref  : (1, Cop, S)     output, channels-major, spatial in lanes
    """
    H2, W2 = H // 2, W // 2
    S = H2 * W2
    HW = H * W
    f32 = jnp.float32

    # ---- fused 2x2 max-pool: raw (Cin, H*W) -> pooled (Cp, S), lanes = spatial
    x = x_ref[0].astype(f32)                                   # (Cin, HW)
    if Cp != Cin:
        # zero-pad channels up to a sublane-tile multiple via a tiny eye-matmul
        eye = (jax.lax.broadcasted_iota(jnp.int32, (Cp, Cin), 0) ==
               jax.lax.broadcasted_iota(jnp.int32, (Cp, Cin), 1)).astype(f32)
        x = jnp.dot(eye, x, preferred_element_type=f32)        # (Cp, HW)
    # v[c, l] = max(x[c, l], x[c, l+W]);  then max with the column to the right.
    v = jnp.maximum(x, pltpu.roll(x, HW - W, axis=1))
    v = jnp.maximum(v, pltpu.roll(v, HW - 1, axis=1))
    # compact lanes {2*h2*W + 2*w2} -> {h2*W2 + w2} with a 0/1 selection matmul
    xp = jnp.dot(v, sel_ref[...], preferred_element_type=f32)  # (Cp, S)

    # ---- hoisted per-tap validity masks (reused by all four convs) ----------
    masks = m_ref[...]                                         # (9, S)
    tap_mask = [masks[t:t + 1, :] for t in range(9)]           # (1, S) rows

    def conv3x3(a, w_ref):
        # register-resident shifts (pltpu.roll along lanes) + im2col:
        # ONE (cout, 9*Cp) x (9*Cp, S) matmul per conv.
        taps = []
        for kh in range(3):
            for kw in range(3):
                t = kh * 3 + kw
                off = (kh - 1) * W2 + (kw - 1)
                xs = a if off == 0 else pltpu.roll(a, (-off) % S, axis=1)
                if t != 4:                                     # centre tap: no mask
                    xs = xs * tap_mask[t]
                taps.append(xs)
        x9 = jnp.concatenate(taps, axis=0)                     # (9*cp, S), aligned
        return jnp.dot(w_ref[...], x9, preferred_element_type=f32)

    def groupnorm(a, g_ref, b_ref, c_real):
        # GroupNorm(num_groups=1): two-pass mean / variance over the real
        # (c_real, S) entries.  Padded channel rows are exactly zero, so the
        # sums are unaffected; only the variance needs a pad correction term.
        n = c_real * S
        n_pad = (a.shape[0] - c_real) * S
        mean = jnp.sum(a) / n
        d = a - mean
        var = jnp.maximum((jnp.sum(d * d) - n_pad * mean * mean) / n, 0.0)
        return d * jax.lax.rsqrt(var + eps) * g_ref[...] + b_ref[...]

    # ---- DoubleConv(in, in, residual=True) -----------------------------------
    h = conv3x3(xp, w1_ref)
    h = _gelu(groupnorm(h, g1_ref, b1_ref, Cin))
    h = conv3x3(h, w2_ref)
    h = _gelu(groupnorm(h, g2_ref, b2_ref, Cin) + xp)          # residual add

    # ---- DoubleConv(in, out) --------------------------------------------------
    y = conv3x3(h, w3_ref)
    y = _gelu(groupnorm(y, g3_ref, b3_ref, Cout))
    y = conv3x3(y, w4_ref)
    y = groupnorm(y, g4_ref, b4_ref, Cout)

    # ---- time embedding: Linear(SiLU(t)), broadcast over spatial lanes -------
    tv = t_ref[0].astype(f32)                                  # (E, 1)
    sv = tv / (1.0 + jnp.exp(-tv))                             # SiLU (tiny, exact)
    emb = jnp.dot(we_ref[...], sv, preferred_element_type=f32) + be_ref[...]

    # lane-dense store, channels-major == already-flattened NCHW
    o_ref[0] = (y + emb).astype(o_ref.dtype)                   # (Cop, S)


# -----------------------------------------------------------------------------
# wrapper
# -----------------------------------------------------------------------------
def _round_up8(c):
    return ((c + 7) // 8) * 8


def down_forward(x_nchw, t, p):
    N, Cin, H, W = x_nchw.shape
    assert H % 2 == 0 and W % 2 == 0
    H2, W2 = H // 2, W // 2
    S, HW = H2 * W2, H * W
    Cout = p["w4"].shape[-1]
    E = t.shape[1]
    Cp, Cop = _round_up8(Cin), _round_up8(Cout)

    # free reshapes only — no pooling / transposes in XLA.
    x_flat = x_nchw.reshape(N, Cin, HW).astype(jnp.float32)
    t_col = t.reshape(N, E, 1).astype(jnp.float32)

    # constants (built with numpy -> baked into the program, no runtime cost)
    l = np.arange(S)
    hh, ww = l // W2, l % W2
    src = 2 * hh * W + 2 * ww
    sel = np.zeros((HW, S), np.float32)
    sel[src, l] = 1.0                                          # pool lane compaction
    masks = np.zeros((9, S), np.float32)
    for kh in range(3):
        for kw in range(3):
            dh, dw = kh - 1, kw - 1
            ok = ((hh + dh >= 0) & (hh + dh < H2) &
                  (ww + dw >= 0) & (ww + dw < W2))
            masks[kh * 3 + kw] = ok.astype(np.float32)
    sel = jnp.asarray(sel)
    masks = jnp.asarray(masks)

    def w9(w, cip, cop):
        # HWIO (3,3,ci,co) -> (cop, 9*cip), tap-major K, channel-padded with 0.
        ci, co = w.shape[2], w.shape[3]
        wp = jnp.zeros((3, 3, cip, cop), jnp.float32)
        wp = wp.at[:, :, :ci, :co].set(w.astype(jnp.float32))
        return wp.reshape(9 * cip, cop).T

    def col(v, cp):
        out = jnp.zeros((cp, 1), jnp.float32)
        return out.at[:v.shape[0], 0].set(v.astype(jnp.float32))

    we_t = jnp.zeros((Cop, E), jnp.float32).at[:Cout, :].set(
        p["we"].T.astype(jnp.float32))
    bee = col(p["bee"], Cop)

    def const(shape):
        # constant operands: resident across grid steps (constant index_map).
        # TODO: at realistic channel counts add pipeline_mode=pl.Buffered(1)
        # here to drop the (unneeded) second pipeline buffer.
        return pl.BlockSpec(shape, lambda n, _r=len(shape): (0,) * _r)

    kernel = functools.partial(_down_kernel, H=H, W=W,
                               Cin=Cin, Cout=Cout, Cp=Cp, Cop=Cop)

    in_specs = [
        pl.BlockSpec((1, Cin, HW), lambda n: (n, 0, 0)),       # raw x (pool fused)
        pl.BlockSpec((1, E, 1), lambda n: (n, 0, 0)),          # t column
        const((HW, S)),                                        # pool selection
        const((9, S)),                                         # tap masks
        const((Cp, 9 * Cp)), const((Cp, 1)), const((Cp, 1)),   # conv1 / gn1
        const((Cp, 9 * Cp)), const((Cp, 1)), const((Cp, 1)),   # conv2 / gn2
        const((Cop, 9 * Cp)), const((Cop, 1)), const((Cop, 1)),  # conv3 / gn3
        const((Cop, 9 * Cop)), const((Cop, 1)), const((Cop, 1)),  # conv4 / gn4
        const((Cop, E)), const((Cop, 1)),                      # emb Linear
    ]

    out = pl.pallas_call(
        kernel,
        out_shape=jax.ShapeDtypeStruct((N, Cop, S), jnp.float32),
        grid=(N,),
        in_specs=in_specs,
        out_specs=pl.BlockSpec((1, Cop, S), lambda n: (n, 0, 0)),
        compiler_params=pltpu.CompilerParams(
            dimension_semantics=("parallel",),      # N=2: both v7x TCs get work
            vmem_limit_bytes=32 * 1024 * 1024),
    )(x_flat, t_col, sel, masks,
      w9(p["w1"], Cp, Cp), col(p["g1"], Cp), col(p["be1"], Cp),
      w9(p["w2"], Cp, Cp), col(p["g2"], Cp), col(p["be2"], Cp),
      w9(p["w3"], Cp, Cop), col(p["g3"], Cop), col(p["be3"], Cop),
      w9(p["w4"], Cop, Cop), col(p["g4"], Cop), col(p["be4"], Cop),
      we_t, bee)

    if Cop != Cout:
        out = out[:, :Cout, :]
    return out.reshape(N, Cout, H2, W2)


# -----------------------------------------------------------------------------
# deterministic parameter init + pure-JAX reference
# -----------------------------------------------------------------------------
def init_down_params(key, in_channels, out_channels, emb_dim):
    ks = jax.random.split(key, 14)

    def conv_w(k, ci, co):  # HWIO
        return jax.random.normal(k, (3, 3, ci, co), jnp.float32) / np.sqrt(9 * ci)

    return {
        "w1": conv_w(ks[0], in_channels, in_channels),
        "g1": 1.0 + 0.1 * jax.random.normal(ks[1], (in_channels,), jnp.float32),
        "be1": 0.1 * jax.random.normal(ks[2], (in_channels,), jnp.float32),
        "w2": conv_w(ks[3], in_channels, in_channels),
        "g2": 1.0 + 0.1 * jax.random.normal(ks[4], (in_channels,), jnp.float32),
        "be2": 0.1 * jax.random.normal(ks[5], (in_channels,), jnp.float32),
        "w3": conv_w(ks[6], in_channels, out_channels),
        "g3": 1.0 + 0.1 * jax.random.normal(ks[7], (out_channels,), jnp.float32),
        "be3": 0.1 * jax.random.normal(ks[8], (out_channels,), jnp.float32),
        "w4": conv_w(ks[9], out_channels, out_channels),
        "g4": 1.0 + 0.1 * jax.random.normal(ks[10], (out_channels,), jnp.float32),
        "be4": 0.1 * jax.random.normal(ks[11], (out_channels,), jnp.float32),
        "we": jax.random.normal(ks[12], (emb_dim, out_channels), jnp.float32)
              / np.sqrt(emb_dim),
        "bee": 0.1 * jax.random.normal(ks[13], (out_channels,), jnp.float32),
    }


def down_reference(x_nchw, t, p):
    """Pure-JAX reference (no Pallas) mirroring the PyTorch forward in f32."""
    hp = jax.lax.Precision.HIGHEST
    x = jnp.transpose(x_nchw, (0, 2, 3, 1)).astype(jnp.float32)
    N, H, W, C = x.shape
    x = x.reshape(N, H // 2, 2, W // 2, 2, C).max(axis=(2, 4))

    def conv(v, w):
        return jax.lax.conv_general_dilated(
            v, w, (1, 1), "SAME",
            dimension_numbers=("NHWC", "HWIO", "NHWC"), precision=hp)

    def gn(v, g, b):
        m = v.mean(axis=(1, 2, 3), keepdims=True)
        var = jnp.square(v - m).mean(axis=(1, 2, 3), keepdims=True)
        return (v - m) * jax.lax.rsqrt(var + 1e-5) * g + b

    gelu = lambda z: jax.nn.gelu(z, approximate=False)

    h = conv(x, p["w1"]); h = gelu(gn(h, p["g1"], p["be1"]))
    h = conv(h, p["w2"]); h = gn(h, p["g2"], p["be2"])
    h = gelu(x + h)
    y = conv(h, p["w3"]); y = gelu(gn(y, p["g3"], p["be3"]))
    y = conv(y, p["w4"]); y = gn(y, p["g4"], p["be4"])
    emb = jnp.dot(jax.nn.silu(t), p["we"], precision=hp) + p["bee"]
    y = y + emb[:, None, None, :]
    return jnp.transpose(y, (0, 3, 1, 2))


if __name__ == "__main__":
    key = jax.random.PRNGKey(0)
    k_x, k_t, k_p = jax.random.split(key, 3)

    N, Cin, H, W = 2, 4, 16, 16
    Cout, emb_dim = 8, 32

    x = jax.random.normal(k_x, (N, Cin, H, W), jnp.float32)
    t = jax.random.normal(k_t, (N, emb_dim), jnp.float32)
    params = init_down_params(k_p, Cin, Cout, emb_dim)

    out = jax.jit(down_forward)(x, t, params)
    out = jax.block_until_ready(out)

    ref = down_reference(x, t, params)
    assert out.shape == (N, Cout, H // 2, W // 2)
    # f32 matmuls; remaining error is the erf approximation / EUP reciprocal.
    np.testing.assert_allclose(np.asarray(out), np.asarray(ref),
                               rtol=1e-2, atol=1e-2)

    print("KERNEL_OK")
</pallas_src>

<mosaic_0001>
module attributes {stable_mosaic.version = 11 : i64} {
  func.func @_down_kernel(%arg0: i32, %arg1: memref<1x4x256xf32, #tpu.memory_space<vmem>>, %arg2: memref<1x32x1xf32, #tpu.memory_space<vmem>>, %arg3: memref<256x64xf32, #tpu.memory_space<vmem>>, %arg4: memref<9x64xf32, #tpu.memory_space<vmem>>, %arg5: memref<8x72xf32, #tpu.memory_space<vmem>>, %arg6: memref<8x1xf32, #tpu.memory_space<vmem>>, %arg7: memref<8x1xf32, #tpu.memory_space<vmem>>, %arg8: memref<8x72xf32, #tpu.memory_space<vmem>>, %arg9: memref<8x1xf32, #tpu.memory_space<vmem>>, %arg10: memref<8x1xf32, #tpu.memory_space<vmem>>, %arg11: memref<8x72xf32, #tpu.memory_space<vmem>>, %arg12: memref<8x1xf32, #tpu.memory_space<vmem>>, %arg13: memref<8x1xf32, #tpu.memory_space<vmem>>, %arg14: memref<8x72xf32, #tpu.memory_space<vmem>>, %arg15: memref<8x1xf32, #tpu.memory_space<vmem>>, %arg16: memref<8x1xf32, #tpu.memory_space<vmem>>, %arg17: memref<8x32xf32, #tpu.memory_space<vmem>>, %arg18: memref<8x1xf32, #tpu.memory_space<vmem>>, %arg19: memref<1x8x64xf32, #tpu.memory_space<vmem>>) attributes {dimension_semantics = [#tpu.dimension_semantics<parallel>], iteration_bounds = array<i64: 2>, scalar_prefetch = 0 : i64, scratch_operands = 0 : i64, tpu.core_type = #tpu.core_type<tc>, window_params = [{transform_indices = @transform_0, window_bounds = array<i64: 1, 4, 256>}, {transform_indices = @transform_1, window_bounds = array<i64: 1, 32, 1>}, {pipeline_mode = #tpu.pipeline_mode<synchronous>, transform_indices = @transform_2, window_bounds = array<i64: 256, 64>}, {pipeline_mode = #tpu.pipeline_mode<synchronous>, transform_indices = @transform_3, window_bounds = array<i64: 9, 64>}, {pipeline_mode = #tpu.pipeline_mode<synchronous>, transform_indices = @transform_4, window_bounds = array<i64: 8, 72>}, {pipeline_mode = #tpu.pipeline_mode<synchronous>, transform_indices = @transform_5, window_bounds = array<i64: 8, 1>}, {pipeline_mode = #tpu.pipeline_mode<synchronous>, transform_indices = @transform_6, window_bounds = array<i64: 8, 1>}, {pipeline_mode = #tpu.pipeline_mode<synchronous>, transform_indices = @transform_7, window_bounds = array<i64: 8, 72>}, {pipeline_mode = #tpu.pipeline_mode<synchronous>, transform_indices = @transform_8, window_bounds = array<i64: 8, 1>}, {pipeline_mode = #tpu.pipeline_mode<synchronous>, transform_indices = @transform_9, window_bounds = array<i64: 8, 1>}, {pipeline_mode = #tpu.pipeline_mode<synchronous>, transform_indices = @transform_10, window_bounds = array<i64: 8, 72>}, {pipeline_mode = #tpu.pipeline_mode<synchronous>, transform_indices = @transform_11, window_bounds = array<i64: 8, 1>}, {pipeline_mode = #tpu.pipeline_mode<synchronous>, transform_indices = @transform_12, window_bounds = array<i64: 8, 1>}, {pipeline_mode = #tpu.pipeline_mode<synchronous>, transform_indices = @transform_13, window_bounds = array<i64: 8, 72>}, {pipeline_mode = #tpu.pipeline_mode<synchronous>, transform_indices = @transform_14, window_bounds = array<i64: 8, 1>}, {pipeline_mode = #tpu.pipeline_mode<synchronous>, transform_indices = @transform_15, window_bounds = array<i64: 8, 1>}, {pipeline_mode = #tpu.pipeline_mode<synchronous>, transform_indices = @transform_16, window_bounds = array<i64: 8, 32>}, {pipeline_mode = #tpu.pipeline_mode<synchronous>, transform_indices = @transform_17, window_bounds = array<i64: 8, 1>}, {transform_indices = @transform_18, window_bounds = array<i64: 1, 8, 64>}]} {
    %c0 = arith.constant 0 : index
    %c0_0 = arith.constant 0 : index
    %c0_1 = arith.constant 0 : index
    %0 = vector.load %arg1[%c0, %c0_0, %c0_1] : memref<1x4x256xf32, #tpu.memory_space<vmem>>, vector<1x4x256xf32>
    %1 = vector.shape_cast %0 : vector<1x4x256xf32> to vector<4x256xf32>
    %2 = tpu.iota {dimensions = array<i32: 0>} : vector<8x4xi32>
    %3 = tpu.iota {dimensions = array<i32: 1>} : vector<8x4xi32>
    %4 = arith.cmpi eq, %2, %3 : vector<8x4xi32>
    %5 = arith.extui %4 : vector<8x4xi1> to vector<8x4xi32>
    %6 = arith.sitofp %5 : vector<8x4xi32> to vector<8x4xf32>
    %cst = arith.constant dense<0.000000e+00> : vector<8x256xf32>
    %7 = tpu.matmul %6, %1, %cst {dimension_numbers = #tpu.dot_dimension_numbers<[1], [0], [0], [1], [0, 0, 1, 1], [], []>} : vector<8x4xf32>, vector<4x256xf32>, vector<8x256xf32> -> vector<8x256xf32>
    %c240_i32 = arith.constant 240 : i32
    %8 = tpu.dynamic_rotate %7 by %c240_i32 dim 1 : vector<8x256xf32>, i32 -> vector<8x256xf32>
    %9 = arith.maximumf %7, %8 : vector<8x256xf32>
    %c255_i32 = arith.constant 255 : i32
    %10 = tpu.dynamic_rotate %9 by %c255_i32 dim 1 : vector<8x256xf32>, i32 -> vector<8x256xf32>
    %11 = arith.maximumf %9, %10 : vector<8x256xf32>
    %c0_2 = arith.constant 0 : index
    %c0_3 = arith.constant 0 : index
    %12 = vector.load %arg3[%c0_2, %c0_3] : memref<256x64xf32, #tpu.memory_space<vmem>>, vector<256x64xf32>
    %cst_4 = arith.constant dense<0.000000e+00> : vector<8x64xf32>
    %13 = tpu.matmul %11, %12, %cst_4 {dimension_numbers = #tpu.dot_dimension_numbers<[1], [0], [0], [1], [0, 0, 1, 1], [], []>} : vector<8x256xf32>, vector<256x64xf32>, vector<8x64xf32> -> vector<8x64xf32>
    %c0_5 = arith.constant 0 : index
    %c0_6 = arith.constant 0 : index
    %14 = vector.load %arg4[%c0_5, %c0_6] : memref<9x64xf32, #tpu.memory_space<vmem>>, vector<9x64xf32>
    %15 = vector.extract_strided_slice %14 {offsets = [0, 0], sizes = [1, 64], strides = [1, 1]} : vector<9x64xf32> to vector<1x64xf32>
    %16 = vector.extract_strided_slice %14 {offsets = [1, 0], sizes = [1, 64], strides = [1, 1]} : vector<9x64xf32> to vector<1x64xf32>
    %17 = vector.extract_strided_slice %14 {offsets = [2, 0], sizes = [1, 64], strides = [1, 1]} : vector<9x64xf32> to vector<1x64xf32>
    %18 = vector.extract_strided_slice %14 {offsets = [3, 0], sizes = [1, 64], strides = [1, 1]} : vector<9x64xf32> to vector<1x64xf32>
    %19 = vector.extract_strided_slice %14 {offsets = [5, 0], sizes = [1, 64], strides = [1, 1]} : vector<9x64xf32> to vector<1x64xf32>
    %20 = vector.extract_strided_slice %14 {offsets = [6, 0], sizes = [1, 64], strides = [1, 1]} : vector<9x64xf32> to vector<1x64xf32>
    %21 = vector.extract_strided_slice %14 {offsets = [7, 0], sizes = [1, 64], strides = [1, 1]} : vector<9x64xf32> to vector<1x64xf32>
    %22 = vector.extract_strided_slice %14 {offsets = [8, 0], sizes = [1, 64], strides = [1, 1]} : vector<9x64xf32> to vector<1x64xf32>
    %c9_i32 = arith.constant 9 : i32
    %23 = tpu.dynamic_rotate %13 by %c9_i32 dim 1 : vector<8x64xf32>, i32 -> vector<8x64xf32>
    %24 = vector.broadcast %15 : vector<1x64xf32> to vector<8x64xf32>
    %25 = arith.mulf %23, %24 : vector<8x64xf32>
    %c8_i32 = arith.constant 8 : i32
    %26 = tpu.dynamic_rotate %13 by %c8_i32 dim 1 : vector<8x64xf32>, i32 -> vector<8x64xf32>
    %27 = vector.broadcast %16 : vector<1x64xf32> to vector<8x64xf32>
    %28 = arith.mulf %26, %27 : vector<8x64xf32>
    %c7_i32 = arith.constant 7 : i32
    %29 = tpu.dynamic_rotate %13 by %c7_i32 dim 1 : vector<8x64xf32>, i32 -> vector<8x64xf32>
    %30 = vector.broadcast %17 : vector<1x64xf32> to vector<8x64xf32>
    %31 = arith.mulf %29, %30 : vector<8x64xf32>
    %c1_i32 = arith.constant 1 : i32
    %32 = tpu.dynamic_rotate %13 by %c1_i32 dim 1 : vector<8x64xf32>, i32 -> vector<8x64xf32>
    %33 = vector.broadcast %18 : vector<1x64xf32> to vector<8x64xf32>
    %34 = arith.mulf %32, %33 : vector<8x64xf32>
    %c63_i32 = arith.constant 63 : i32
    %35 = tpu.dynamic_rotate %13 by %c63_i32 dim 1 : vector<8x64xf32>, i32 -> vector<8x64xf32>
    %36 = vector.broadcast %19 : vector<1x64xf32> to vector<8x64xf32>
    %37 = arith.mulf %35, %36 : vector<8x64xf32>
    %c57_i32 = arith.constant 57 : i32
    %38 = tpu.dynamic_rotate %13 by %c57_i32 dim 1 : vector<8x64xf32>, i32 -> vector<8x64xf32>
    %39 = vector.broadcast %20 : vector<1x64xf32> to vector<8x64xf32>
    %40 = arith.mulf %38, %39 : vector<8x64xf32>
    %c56_i32 = arith.constant 56 : i32
    %41 = tpu.dynamic_rotate %13 by %c56_i32 dim 1 : vector<8x64xf32>, i32 -> vector<8x64xf32>
    %42 = vector.broadcast %21 : vector<1x64xf32> to vector<8x64xf32>
    %43 = arith.mulf %41, %42 : vector<8x64xf32>
    %c55_i32 = arith.constant 55 : i32
    %44 = tpu.dynamic_rotate %13 by %c55_i32 dim 1 : vector<8x64xf32>, i32 -> vector<8x64xf32>
    %45 = vector.broadcast %22 : vector<1x64xf32> to vector<8x64xf32>
    %46 = arith.mulf %44, %45 : vector<8x64xf32>
    %47 = tpu.concatenate %25, %28, %31, %34, %13, %37, %40, %43, %46 in 0 : vector<8x64xf32>, vector<8x64xf32>, vector<8x64xf32>, vector<8x64xf32>, vector<8x64xf32>, vector<8x64xf32>, vector<8x64xf32>, vector<8x64xf32>, vector<8x64xf32> -> vector<72x64xf32>
    %c0_7 = arith.constant 0 : index
    %c0_8 = arith.constant 0 : index
    %48 = vector.load %arg5[%c0_7, %c0_8] : memref<8x72xf32, #tpu.memory_space<vmem>>, vector<8x72xf32>
    %cst_9 = arith.constant dense<0.000000e+00> : vector<8x64xf32>
    %49 = tpu.matmul %48, %47, %cst_9 {dimension_numbers = #tpu.dot_dimension_numbers<[1], [0], [0], [1], [0, 0, 1, 1], [], []>} : vector<8x72xf32>, vector<72x64xf32>, vector<8x64xf32> -> vector<8x64xf32>
    %50 = vector.shape_cast %49 : vector<8x64xf32> to vector<1x8x64xf32>
    %cst_10 = arith.constant dense<0.000000e+00> : vector<1xf32>
    %51 = vector.multi_reduction <add>, %50, %cst_10 [1, 2] : vector<1x8x64xf32> to vector<1xf32>
    %52 = vector.shape_cast %51 : vector<1xf32> to vector<1x1x1xf32>
    %53 = vector.extract %52[0, 0, 0] : f32 from vector<1x1x1xf32>
    %cst_11 = arith.constant 2.560000e+02 : f32
    %54 = arith.divf %53, %cst_11 : f32
    %55 = vector.broadcast %54 : f32 to vector<8x64xf32>
    %56 = arith.subf %49, %55 : vector<8x64xf32>
    %57 = arith.mulf %56, %56 : vector<8x64xf32>
    %58 = vector.shape_cast %57 : vector<8x64xf32> to vector<1x8x64xf32>
    %cst_12 = arith.constant dense<0.000000e+00> : vector<1xf32>
    %59 = vector.multi_reduction <add>, %58, %cst_12 [1, 2] : vector<1x8x64xf32> to vector<1xf32>
    %60 = vector.shape_cast %59 : vector<1xf32> to vector<1x1x1xf32>
    %61 = vector.extract %60[0, 0, 0] : f32 from vector<1x1x1xf32>
    %cst_13 = arith.constant 2.560000e+02 : f32
    %62 = arith.mulf %cst_13, %54 : f32
    %63 = arith.mulf %62, %54 : f32
    %64 = arith.subf %61, %63 : f32
    %cst_14 = arith.constant 2.560000e+02 : f32
    %65 = arith.divf %64, %cst_14 : f32
    %cst_15 = arith.constant 0.000000e+00 : f32
    %66 = arith.maximumf %65, %cst_15 : f32
    %cst_16 = arith.constant 9.99999974E-6 : f32
    %67 = arith.addf %66, %cst_16 : f32
    %68 = math.rsqrt %67 : f32
    %69 = vector.broadcast %68 : f32 to vector<8x64xf32>
    %70 = arith.mulf %56, %69 : vector<8x64xf32>
    %c0_17 = arith.constant 0 : index
    %c0_18 = arith.constant 0 : index
    %71 = vector.load %arg6[%c0_17, %c0_18] : memref<8x1xf32, #tpu.memory_space<vmem>>, vector<8x1xf32>
    %72 = vector.broadcast %71 : vector<8x1xf32> to vector<8x64xf32>
    %73 = arith.mulf %70, %72 : vector<8x64xf32>
    %c0_19 = arith.constant 0 : index
    %c0_20 = arith.constant 0 : index
    %74 = vector.load %arg7[%c0_19, %c0_20] : memref<8x1xf32, #tpu.memory_space<vmem>>, vector<8x1xf32>
    %75 = vector.broadcast %74 : vector<8x1xf32> to vector<8x64xf32>
    %76 = arith.addf %73, %75 : vector<8x64xf32>
    %77 = math.absf %76 : vector<8x64xf32>
    %cst_21 = arith.constant 0.707106769 : f32
    %78 = vector.broadcast %cst_21 : f32 to vector<8x64xf32>
    %79 = arith.mulf %77, %78 : vector<8x64xf32>
    %cst_22 = arith.constant 0.327591091 : f32
    %80 = vector.broadcast %cst_22 : f32 to vector<8x64xf32>
    %81 = arith.mulf %80, %79 : vector<8x64xf32>
    %cst_23 = arith.constant 1.000000e+00 : f32
    %82 = vector.broadcast %cst_23 : f32 to vector<8x64xf32>
    %83 = arith.addf %82, %81 : vector<8x64xf32>
    %84 = tpu.reciprocal %83 {approx = true} : vector<8x64xf32> -> vector<8x64xf32>
    %cst_24 = arith.constant 1.06140542 : f32
    %85 = vector.broadcast %cst_24 : f32 to vector<8x64xf32>
    %86 = arith.mulf %84, %85 : vector<8x64xf32>
    %cst_25 = arith.constant -1.45315206 : f32
    %87 = vector.broadcast %cst_25 : f32 to vector<8x64xf32>
    %88 = arith.addf %87, %86 : vector<8x64xf32>
    %89 = arith.mulf %84, %88 : vector<8x64xf32>
    %cst_26 = arith.constant 1.42141378 : f32
    %90 = vector.broadcast %cst_26 : f32 to vector<8x64xf32>
    %91 = arith.addf %90, %89 : vector<8x64xf32>
    %92 = arith.mulf %84, %91 : vector<8x64xf32>
    %cst_27 = arith.constant -0.284496725 : f32
    %93 = vector.broadcast %cst_27 : f32 to vector<8x64xf32>
    %94 = arith.addf %93, %92 : vector<8x64xf32>
    %95 = arith.mulf %84, %94 : vector<8x64xf32>
    %cst_28 = arith.constant 0.254829586 : f32
    %96 = vector.broadcast %cst_28 : f32 to vector<8x64xf32>
    %97 = arith.addf %96, %95 : vector<8x64xf32>
    %98 = arith.mulf %84, %97 : vector<8x64xf32>
    %cst_29 = arith.constant 0.000000e+00 : f32
    %99 = vector.broadcast %cst_29 : f32 to vector<8x64xf32>
    %100 = arith.subf %99, %79 : vector<8x64xf32>
    %101 = arith.mulf %100, %79 : vector<8x64xf32>
    %102 = math.exp %101 : vector<8x64xf32>
    %103 = arith.mulf %98, %102 : vector<8x64xf32>
    %cst_30 = arith.constant 1.000000e+00 : f32
    %104 = vector.broadcast %cst_30 : f32 to vector<8x64xf32>
    %105 = arith.subf %104, %103 : vector<8x64xf32>
    %cst_31 = arith.constant 0.000000e+00 : f32
    %106 = vector.broadcast %cst_31 : f32 to vector<8x64xf32>
    %107 = arith.cmpf oge, %76, %106 : vector<8x64xf32>
    %cst_32 = arith.constant 0.000000e+00 : f32
    %108 = vector.broadcast %cst_32 : f32 to vector<8x64xf32>
    %109 = arith.subf %108, %105 : vector<8x64xf32>
    %110 = arith.select %107, %105, %109 : vector<8x64xi1>, vector<8x64xf32>
    %cst_33 = arith.constant 5.000000e-01 : f32
    %111 = vector.broadcast %cst_33 : f32 to vector<8x64xf32>
    %112 = arith.mulf %111, %76 : vector<8x64xf32>
    %cst_34 = arith.constant 1.000000e+00 : f32
    %113 = vector.broadcast %cst_34 : f32 to vector<8x64xf32>
    %114 = arith.addf %113, %110 : vector<8x64xf32>
    %115 = arith.mulf %112, %114 : vector<8x64xf32>
    %c9_i32_35 = arith.constant 9 : i32
    %116 = tpu.dynamic_rotate %115 by %c9_i32_35 dim 1 : vector<8x64xf32>, i32 -> vector<8x64xf32>
    %117 = vector.broadcast %15 : vector<1x64xf32> to vector<8x64xf32>
    %118 = arith.mulf %116, %117 : vector<8x64xf32>
    %c8_i32_36 = arith.constant 8 : i32
    %119 = tpu.dynamic_rotate %115 by %c8_i32_36 dim 1 : vector<8x64xf32>, i32 -> vector<8x64xf32>
    %120 = vector.broadcast %16 : vector<1x64xf32> to vector<8x64xf32>
    %121 = arith.mulf %119, %120 : vector<8x64xf32>
    %c7_i32_37 = arith.constant 7 : i32
    %122 = tpu.dynamic_rotate %115 by %c7_i32_37 dim 1 : vector<8x64xf32>, i32 -> vector<8x64xf32>
    %123 = vector.broadcast %17 : vector<1x64xf32> to vector<8x64xf32>
    %124 = arith.mulf %122, %123 : vector<8x64xf32>
    %c1_i32_38 = arith.constant 1 : i32
    %125 = tpu.dynamic_rotate %115 by %c1_i32_38 dim 1 : vector<8x64xf32>, i32 -> vector<8x64xf32>
    %126 = vector.broadcast %18 : vector<1x64xf32> to vector<8x64xf32>
    %127 = arith.mulf %125, %126 : vector<8x64xf32>
    %c63_i32_39 = arith.constant 63 : i32
    %128 = tpu.dynamic_rotate %115 by %c63_i32_39 dim 1 : vector<8x64xf32>, i32 -> vector<8x64xf32>
    %129 = vector.broadcast %19 : vector<1x64xf32> to vector<8x64xf32>
    %130 = arith.mulf %128, %129 : vector<8x64xf32>
    %c57_i32_40 = arith.constant 57 : i32
    %131 = tpu.dynamic_rotate %115 by %c57_i32_40 dim 1 : vector<8x64xf32>, i32 -> vector<8x64xf32>
    %132 = vector.broadcast %20 : vector<1x64xf32> to vector<8x64xf32>
    %133 = arith.mulf %131, %132 : vector<8x64xf32>
    %c56_i32_41 = arith.constant 56 : i32
    %134 = tpu.dynamic_rotate %115 by %c56_i32_41 dim 1 : vector<8x64xf32>, i32 -> vector<8x64xf32>
    %135 = vector.broadcast %21 : vector<1x64xf32> to vector<8x64xf32>
    %136 = arith.mulf %134, %135 : vector<8x64xf32>
    %c55_i32_42 = arith.constant 55 : i32
    %137 = tpu.dynamic_rotate %115 by %c55_i32_42 dim 1 : vector<8x64xf32>, i32 -> vector<8x64xf32>
    %138 = vector.broadcast %22 : vector<1x64xf32> to vector<8x64xf32>
    %139 = arith.mulf %137, %138 : vector<8x64xf32>
    %140 = tpu.concatenate %118, %121, %124, %127, %115, %130, %133, %136, %139 in 0 : vector<8x64xf32>, vector<8x64xf32>, vector<8x64xf32>, vector<8x64xf32>, vector<8x64xf32>, vector<8x64xf32>, vector<8x64xf32>, vector<8x64xf32>, vector<8x64xf32> -> vector<72x64xf32>
    %c0_43 = arith.constant 0 : index
    %c0_44 = arith.constant 0 : index
    %141 = vector.load %arg8[%c0_43, %c0_44] : memref<8x72xf32, #tpu.memory_space<vmem>>, vector<8x72xf32>
    %cst_45 = arith.constant dense<0.000000e+00> : vector<8x64xf32>
    %142 = tpu.matmul %141, %140, %cst_45 {dimension_numbers = #tpu.dot_dimension_numbers<[1], [0], [0], [1], [0, 0, 1, 1], [], []>} : vector<8x72xf32>, vector<72x64xf32>, vector<8x64xf32> -> vector<8x64xf32>
    %143 = vector.shape_cast %142 : vector<8x64xf32> to vector<1x8x64xf32>
    %cst_46 = arith.constant dense<0.000000e+00> : vector<1xf32>
    %144 = vector.multi_reduction <add>, %143, %cst_46 [1, 2] : vector<1x8x64xf32> to vector<1xf32>
    %145 = vector.shape_cast %144 : vector<1xf32> to vector<1x1x1xf32>
    %146 = vector.extract %145[0, 0, 0] : f32 from vector<1x1x1xf32>
    %cst_47 = arith.constant 2.560000e+02 : f32
    %147 = arith.divf %146, %cst_47 : f32
    %148 = vector.broadcast %147 : f32 to vector<8x64xf32>
    %149 = arith.subf %142, %148 : vector<8x64xf32>
    %150 = arith.mulf %149, %149 : vector<8x64xf32>
    %151 = vector.shape_cast %150 : vector<8x64xf32> to vector<1x8x64xf32>
    %cst_48 = arith.constant dense<0.000000e+00> : vector<1xf32>
    %152 = vector.multi_reduction <add>, %151, %cst_48 [1, 2] : vector<1x8x64xf32> to vector<1xf32>
    %153 = vector.shape_cast %152 : vector<1xf32> to vector<1x1x1xf32>
    %154 = vector.extract %153[0, 0, 0] : f32 from vector<1x1x1xf32>
    %cst_49 = arith.constant 2.560000e+02 : f32
    %155 = arith.mulf %cst_49, %147 : f32
    %156 = arith.mulf %155, %147 : f32
    %157 = arith.subf %154, %156 : f32
    %cst_50 = arith.constant 2.560000e+02 : f32
    %158 = arith.divf %157, %cst_50 : f32
    %cst_51 = arith.constant 0.000000e+00 : f32
    %159 = arith.maximumf %158, %cst_51 : f32
    %cst_52 = arith.constant 9.99999974E-6 : f32
    %160 = arith.addf %159, %cst_52 : f32
    %161 = math.rsqrt %160 : f32
    %162 = vector.broadcast %161 : f32 to vector<8x64xf32>
    %163 = arith.mulf %149, %162 : vector<8x64xf32>
    %c0_53 = arith.constant 0 : index
    %c0_54 = arith.constant 0 : index
    %164 = vector.load %arg9[%c0_53, %c0_54] : memref<8x1xf32, #tpu.memory_space<vmem>>, vector<8x1xf32>
    %165 = vector.broadcast %164 : vector<8x1xf32> to vector<8x64xf32>
    %166 = arith.mulf %163, %165 : vector<8x64xf32>
    %c0_55 = arith.constant 0 : index
    %c0_56 = arith.constant 0 : index
    %167 = vector.load %arg10[%c0_55, %c0_56] : memref<8x1xf32, #tpu.memory_space<vmem>>, vector<8x1xf32>
    %168 = vector.broadcast %167 : vector<8x1xf32> to vector<8x64xf32>
    %169 = arith.addf %166, %168 : vector<8x64xf32>
    %170 = arith.addf %169, %13 : vector<8x64xf32>
    %171 = math.absf %170 : vector<8x64xf32>
    %cst_57 = arith.constant 0.707106769 : f32
    %172 = vector.broadcast %cst_57 : f32 to vector<8x64xf32>
    %173 = arith.mulf %171, %172 : vector<8x64xf32>
    %cst_58 = arith.constant 0.327591091 : f32
    %174 = vector.broadcast %cst_58 : f32 to vector<8x64xf32>
    %175 = arith.mulf %174, %173 : vector<8x64xf32>
    %cst_59 = arith.constant 1.000000e+00 : f32
    %176 = vector.broadcast %cst_59 : f32 to vector<8x64xf32>
    %177 = arith.addf %176, %175 : vector<8x64xf32>
    %178 = tpu.reciprocal %177 {approx = true} : vector<8x64xf32> -> vector<8x64xf32>
    %cst_60 = arith.constant 1.06140542 : f32
    %179 = vector.broadcast %cst_60 : f32 to vector<8x64xf32>
    %180 = arith.mulf %178, %179 : vector<8x64xf32>
    %cst_61 = arith.constant -1.45315206 : f32
    %181 = vector.broadcast %cst_61 : f32 to vector<8x64xf32>
    %182 = arith.addf %181, %180 : vector<8x64xf32>
    %183 = arith.mulf %178, %182 : vector<8x64xf32>
    %cst_62 = arith.constant 1.42141378 : f32
    %184 = vector.broadcast %cst_62 : f32 to vector<8x64xf32>
    %185 = arith.addf %184, %183 : vector<8x64xf32>
    %186 = arith.mulf %178, %185 : vector<8x64xf32>
    %cst_63 = arith.constant -0.284496725 : f32
    %187 = vector.broadcast %cst_63 : f32 to vector<8x64xf32>
    %188 = arith.addf %187, %186 : vector<8x64xf32>
    %189 = arith.mulf %178, %188 : vector<8x64xf32>
    %cst_64 = arith.constant 0.254829586 : f32
    %190 = vector.broadcast %cst_64 : f32 to vector<8x64xf32>
    %191 = arith.addf %190, %189 : vector<8x64xf32>
    %192 = arith.mulf %178, %191 : vector<8x64xf32>
    %cst_65 = arith.constant 0.000000e+00 : f32
    %193 = vector.broadcast %cst_65 : f32 to vector<8x64xf32>
    %194 = arith.subf %193, %173 : vector<8x64xf32>
    %195 = arith.mulf %194, %173 : vector<8x64xf32>
    %196 = math.exp %195 : vector<8x64xf32>
    %197 = arith.mulf %192, %196 : vector<8x64xf32>
    %cst_66 = arith.constant 1.000000e+00 : f32
    %198 = vector.broadcast %cst_66 : f32 to vector<8x64xf32>
    %199 = arith.subf %198, %197 : vector<8x64xf32>
    %cst_67 = arith.constant 0.000000e+00 : f32
    %200 = vector.broadcast %cst_67 : f32 to vector<8x64xf32>
    %201 = arith.cmpf oge, %170, %200 : vector<8x64xf32>
    %cst_68 = arith.constant 0.000000e+00 : f32
    %202 = vector.broadcast %cst_68 : f32 to vector<8x64xf32>
    %203 = arith.subf %202, %199 : vector<8x64xf32>
    %204 = arith.select %201, %199, %203 : vector<8x64xi1>, vector<8x64xf32>
    %cst_69 = arith.constant 5.000000e-01 : f32
    %205 = vector.broadcast %cst_69 : f32 to vector<8x64xf32>
    %206 = arith.mulf %205, %170 : vector<8x64xf32>
    %cst_70 = arith.constant 1.000000e+00 : f32
    %207 = vector.broadcast %cst_70 : f32 to vector<8x64xf32>
    %208 = arith.addf %207, %204 : vector<8x64xf32>
    %209 = arith.mulf %206, %208 : vector<8x64xf32>
    %c9_i32_71 = arith.constant 9 : i32
    %210 = tpu.dynamic_rotate %209 by %c9_i32_71 dim 1 : vector<8x64xf32>, i32 -> vector<8x64xf32>
    %211 = vector.broadcast %15 : vector<1x64xf32> to vector<8x64xf32>
    %212 = arith.mulf %210, %211 : vector<8x64xf32>
    %c8_i32_72 = arith.constant 8 : i32
    %213 = tpu.dynamic_rotate %209 by %c8_i32_72 dim 1 : vector<8x64xf32>, i32 -> vector<8x64xf32>
    %214 = vector.broadcast %16 : vector<1x64xf32> to vector<8x64xf32>
    %215 = arith.mulf %213, %214 : vector<8x64xf32>
    %c7_i32_73 = arith.constant 7 : i32
    %216 = tpu.dynamic_rotate %209 by %c7_i32_73 dim 1 : vector<8x64xf32>, i32 -> vector<8x64xf32>
    %217 = vector.broadcast %17 : vector<1x64xf32> to vector<8x64xf32>
    %218 = arith.mulf %216, %217 : vector<8x64xf32>
    %c1_i32_74 = arith.constant 1 : i32
    %219 = tpu.dynamic_rotate %209 by %c1_i32_74 dim 1 : vector<8x64xf32>, i32 -> vector<8x64xf32>
    %220 = vector.broadcast %18 : vector<1x64xf32> to vector<8x64xf32>
    %221 = arith.mulf %219, %220 : vector<8x64xf32>
    %c63_i32_75 = arith.constant 63 : i32
    %222 = tpu.dynamic_rotate %209 by %c63_i32_75 dim 1 : vector<8x64xf32>, i32 -> vector<8x64xf32>
    %223 = vector.broadcast %19 : vector<1x64xf32> to vector<8x64xf32>
    %224 = arith.mulf %222, %223 : vector<8x64xf32>
    %c57_i32_76 = arith.constant 57 : i32
    %225 = tpu.dynamic_rotate %209 by %c57_i32_76 dim 1 : vector<8x64xf32>, i32 -> vector<8x64xf32>
    %226 = vector.broadcast %20 : vector<1x64xf32> to vector<8x64xf32>
    %227 = arith.mulf %225, %226 : vector<8x64xf32>
    %c56_i32_77 = arith.constant 56 : i32
    %228 = tpu.dynamic_rotate %209 by %c56_i32_77 dim 1 : vector<8x64xf32>, i32 -> vector<8x64xf32>
    %229 = vector.broadcast %21 : vector<1x64xf32> to vector<8x64xf32>
    %230 = arith.mulf %228, %229 : vector<8x64xf32>
    %c55_i32_78 = arith.constant 55 : i32
    %231 = tpu.dynamic_rotate %209 by %c55_i32_78 dim 1 : vector<8x64xf32>, i32 -> vector<8x64xf32>
    %232 = vector.broadcast %22 : vector<1x64xf32> to vector<8x64xf32>
    %233 = arith.mulf %231, %232 : vector<8x64xf32>
    %234 = tpu.concatenate %212, %215, %218, %221, %209, %224, %227, %230, %233 in 0 : vector<8x64xf32>, vector<8x64xf32>, vector<8x64xf32>, vector<8x64xf32>, vector<8x64xf32>, vector<8x64xf32>, vector<8x64xf32>, vector<8x64xf32>, vector<8x64xf32> -> vector<72x64xf32>
    %c0_79 = arith.constant 0 : index
    %c0_80 = arith.constant 0 : index
    %235 = vector.load %arg11[%c0_79, %c0_80] : memref<8x72xf32, #tpu.memory_space<vmem>>, vector<8x72xf32>
    %cst_81 = arith.constant dense<0.000000e+00> : vector<8x64xf32>
    %236 = tpu.matmul %235, %234, %cst_81 {dimension_numbers = #tpu.dot_dimension_numbers<[1], [0], [0], [1], [0, 0, 1, 1], [], []>} : vector<8x72xf32>, vector<72x64xf32>, vector<8x64xf32> -> vector<8x64xf32>
    %237 = vector.shape_cast %236 : vector<8x64xf32> to vector<1x8x64xf32>
    %cst_82 = arith.constant dense<0.000000e+00> : vector<1xf32>
    %238 = vector.multi_reduction <add>, %237, %cst_82 [1, 2] : vector<1x8x64xf32> to vector<1xf32>
    %239 = vector.shape_cast %238 : vector<1xf32> to vector<1x1x1xf32>
    %240 = vector.extract %239[0, 0, 0] : f32 from vector<1x1x1xf32>
    %cst_83 = arith.constant 5.120000e+02 : f32
    %241 = arith.divf %240, %cst_83 : f32
    %242 = vector.broadcast %241 : f32 to vector<8x64xf32>
    %243 = arith.subf %236, %242 : vector<8x64xf32>
    %244 = arith.mulf %243, %243 : vector<8x64xf32>
    %245 = vector.shape_cast %244 : vector<8x64xf32> to vector<1x8x64xf32>
    %cst_84 = arith.constant dense<0.000000e+00> : vector<1xf32>
    %246 = vector.multi_reduction <add>, %245, %cst_84 [1, 2] : vector<1x8x64xf32> to vector<1xf32>
    %247 = vector.shape_cast %246 : vector<1xf32> to vector<1x1x1xf32>
    %248 = vector.extract %247[0, 0, 0] : f32 from vector<1x1x1xf32>
    %cst_85 = arith.constant 0.000000e+00 : f32
    %249 = arith.mulf %cst_85, %241 : f32
    %250 = arith.mulf %249, %241 : f32
    %251 = arith.subf %248, %250 : f32
    %cst_86 = arith.constant 5.120000e+02 : f32
    %252 = arith.divf %251, %cst_86 : f32
    %cst_87 = arith.constant 0.000000e+00 : f32
    %253 = arith.maximumf %252, %cst_87 : f32
    %cst_88 = arith.constant 9.99999974E-6 : f32
    %254 = arith.addf %253, %cst_88 : f32
    %255 = math.rsqrt %254 : f32
    %256 = vector.broadcast %255 : f32 to vector<8x64xf32>
    %257 = arith.mulf %243, %256 : vector<8x64xf32>
    %c0_89 = arith.constant 0 : index
    %c0_90 = arith.constant 0 : index
    %258 = vector.load %arg12[%c0_89, %c0_90] : memref<8x1xf32, #tpu.memory_space<vmem>>, vector<8x1xf32>
    %259 = vector.broadcast %258 : vector<8x1xf32> to vector<8x64xf32>
    %260 = arith.mulf %257, %259 : vector<8x64xf32>
    %c0_91 = arith.constant 0 : index
    %c0_92 = arith.constant 0 : index
    %261 = vector.load %arg13[%c0_91, %c0_92] : memref<8x1xf32, #tpu.memory_space<vmem>>, vector<8x1xf32>
    %262 = vector.broadcast %261 : vector<8x1xf32> to vector<8x64xf32>
    %263 = arith.addf %260, %262 : vector<8x64xf32>
    %264 = math.absf %263 : vector<8x64xf32>
    %cst_93 = arith.constant 0.707106769 : f32
    %265 = vector.broadcast %cst_93 : f32 to vector<8x64xf32>
    %266 = arith.mulf %264, %265 : vector<8x64xf32>
    %cst_94 = arith.constant 0.327591091 : f32
    %267 = vector.broadcast %cst_94 : f32 to vector<8x64xf32>
    %268 = arith.mulf %267, %266 : vector<8x64xf32>
    %cst_95 = arith.constant 1.000000e+00 : f32
    %269 = vector.broadcast %cst_95 : f32 to vector<8x64xf32>
    %270 = arith.addf %269, %268 : vector<8x64xf32>
    %271 = tpu.reciprocal %270 {approx = true} : vector<8x64xf32> -> vector<8x64xf32>
    %cst_96 = arith.constant 1.06140542 : f32
    %272 = vector.broadcast %cst_96 : f32 to vector<8x64xf32>
    %273 = arith.mulf %271, %272 : vector<8x64xf32>
    %cst_97 = arith.constant -1.45315206 : f32
    %274 = vector.broadcast %cst_97 : f32 to vector<8x64xf32>
    %275 = arith.addf %274, %273 : vector<8x64xf32>
    %276 = arith.mulf %271, %275 : vector<8x64xf32>
    %cst_98 = arith.constant 1.42141378 : f32
    %277 = vector.broadcast %cst_98 : f32 to vector<8x64xf32>
    %278 = arith.addf %277, %276 : vector<8x64xf32>
    %279 = arith.mulf %271, %278 : vector<8x64xf32>
    %cst_99 = arith.constant -0.284496725 : f32
    %280 = vector.broadcast %cst_99 : f32 to vector<8x64xf32>
    %281 = arith.addf %280, %279 : vector<8x64xf32>
    %282 = arith.mulf %271, %281 : vector<8x64xf32>
    %cst_100 = arith.constant 0.254829586 : f32
    %283 = vector.broadcast %cst_100 : f32 to vector<8x64xf32>
    %284 = arith.addf %283, %282 : vector<8x64xf32>
    %285 = arith.mulf %271, %284 : vector<8x64xf32>
    %cst_101 = arith.constant 0.000000e+00 : f32
    %286 = vector.broadcast %cst_101 : f32 to vector<8x64xf32>
    %287 = arith.subf %286, %266 : vector<8x64xf32>
    %288 = arith.mulf %287, %266 : vector<8x64xf32>
    %289 = math.exp %288 : vector<8x64xf32>
    %290 = arith.mulf %285, %289 : vector<8x64xf32>
    %cst_102 = arith.constant 1.000000e+00 : f32
    %291 = vector.broadcast %cst_102 : f32 to vector<8x64xf32>
    %292 = arith.subf %291, %290 : vector<8x64xf32>
    %cst_103 = arith.constant 0.000000e+00 : f32
    %293 = vector.broadcast %cst_103 : f32 to vector<8x64xf32>
    %294 = arith.cmpf oge, %263, %293 : vector<8x64xf32>
    %cst_104 = arith.constant 0.000000e+00 : f32
    %295 = vector.broadcast %cst_104 : f32 to vector<8x64xf32>
    %296 = arith.subf %295, %292 : vector<8x64xf32>
    %297 = arith.select %294, %292, %296 : vector<8x64xi1>, vector<8x64xf32>
    %cst_105 = arith.constant 5.000000e-01 : f32
    %298 = vector.broadcast %cst_105 : f32 to vector<8x64xf32>
    %299 = arith.mulf %298, %263 : vector<8x64xf32>
    %cst_106 = arith.constant 1.000000e+00 : f32
    %300 = vector.broadcast %cst_106 : f32 to vector<8x64xf32>
    %301 = arith.addf %300, %297 : vector<8x64xf32>
    %302 = arith.mulf %299, %301 : vector<8x64xf32>
    %c9_i32_107 = arith.constant 9 : i32
    %303 = tpu.dynamic_rotate %302 by %c9_i32_107 dim 1 : vector<8x64xf32>, i32 -> vector<8x64xf32>
    %304 = vector.broadcast %15 : vector<1x64xf32> to vector<8x64xf32>
    %305 = arith.mulf %303, %304 : vector<8x64xf32>
    %c8_i32_108 = arith.constant 8 : i32
    %306 = tpu.dynamic_rotate %302 by %c8_i32_108 dim 1 : vector<8x64xf32>, i32 -> vector<8x64xf32>
    %307 = vector.broadcast %16 : vector<1x64xf32> to vector<8x64xf32>
    %308 = arith.mulf %306, %307 : vector<8x64xf32>
    %c7_i32_109 = arith.constant 7 : i32
    %309 = tpu.dynamic_rotate %302 by %c7_i32_109 dim 1 : vector<8x64xf32>, i32 -> vector<8x64xf32>
    %310 = vector.broadcast %17 : vector<1x64xf32> to vector<8x64xf32>
    %311 = arith.mulf %309, %310 : vector<8x64xf32>
    %c1_i32_110 = arith.constant 1 : i32
    %312 = tpu.dynamic_rotate %302 by %c1_i32_110 dim 1 : vector<8x64xf32>, i32 -> vector<8x64xf32>
    %313 = vector.broadcast %18 : vector<1x64xf32> to vector<8x64xf32>
    %314 = arith.mulf %312, %313 : vector<8x64xf32>
    %c63_i32_111 = arith.constant 63 : i32
    %315 = tpu.dynamic_rotate %302 by %c63_i32_111 dim 1 : vector<8x64xf32>, i32 -> vector<8x64xf32>
    %316 = vector.broadcast %19 : vector<1x64xf32> to vector<8x64xf32>
    %317 = arith.mulf %315, %316 : vector<8x64xf32>
    %c57_i32_112 = arith.constant 57 : i32
    %318 = tpu.dynamic_rotate %302 by %c57_i32_112 dim 1 : vector<8x64xf32>, i32 -> vector<8x64xf32>
    %319 = vector.broadcast %20 : vector<1x64xf32> to vector<8x64xf32>
    %320 = arith.mulf %318, %319 : vector<8x64xf32>
    %c56_i32_113 = arith.constant 56 : i32
    %321 = tpu.dynamic_rotate %302 by %c56_i32_113 dim 1 : vector<8x64xf32>, i32 -> vector<8x64xf32>
    %322 = vector.broadcast %21 : vector<1x64xf32> to vector<8x64xf32>
    %323 = arith.mulf %321, %322 : vector<8x64xf32>
    %c55_i32_114 = arith.constant 55 : i32
    %324 = tpu.dynamic_rotate %302 by %c55_i32_114 dim 1 : vector<8x64xf32>, i32 -> vector<8x64xf32>
    %325 = vector.broadcast %22 : vector<1x64xf32> to vector<8x64xf32>
    %326 = arith.mulf %324, %325 : vector<8x64xf32>
    %327 = tpu.concatenate %305, %308, %311, %314, %302, %317, %320, %323, %326 in 0 : vector<8x64xf32>, vector<8x64xf32>, vector<8x64xf32>, vector<8x64xf32>, vector<8x64xf32>, vector<8x64xf32>, vector<8x64xf32>, vector<8x64xf32>, vector<8x64xf32> -> vector<72x64xf32>
    %c0_115 = arith.constant 0 : index
    %c0_116 = arith.constant 0 : index
    %328 = vector.load %arg14[%c0_115, %c0_116] : memref<8x72xf32, #tpu.memory_space<vmem>>, vector<8x72xf32>
    %cst_117 = arith.constant dense<0.000000e+00> : vector<8x64xf32>
    %329 = tpu.matmul %328, %327, %cst_117 {dimension_numbers = #tpu.dot_dimension_numbers<[1], [0], [0], [1], [0, 0, 1, 1], [], []>} : vector<8x72xf32>, vector<72x64xf32>, vector<8x64xf32> -> vector<8x64xf32>
    %330 = vector.shape_cast %329 : vector<8x64xf32> to vector<1x8x64xf32>
    %cst_118 = arith.constant dense<0.000000e+00> : vector<1xf32>
    %331 = vector.multi_reduction <add>, %330, %cst_118 [1, 2] : vector<1x8x64xf32> to vector<1xf32>
    %332 = vector.shape_cast %331 : vector<1xf32> to vector<1x1x1xf32>
    %333 = vector.extract %332[0, 0, 0] : f32 from vector<1x1x1xf32>
    %cst_119 = arith.constant 5.120000e+02 : f32
    %334 = arith.divf %333, %cst_119 : f32
    %335 = vector.broadcast %334 : f32 to vector<8x64xf32>
    %336 = arith.subf %329, %335 : vector<8x64xf32>
    %337 = arith.mulf %336, %336 : vector<8x64xf32>
    %338 = vector.shape_cast %337 : vector<8x64xf32> to vector<1x8x64xf32>
    %cst_120 = arith.constant dense<0.000000e+00> : vector<1xf32>
    %339 = vector.multi_reduction <add>, %338, %cst_120 [1, 2] : vector<1x8x64xf32> to vector<1xf32>
    %340 = vector.shape_cast %339 : vector<1xf32> to vector<1x1x1xf32>
    %341 = vector.extract %340[0, 0, 0] : f32 from vector<1x1x1xf32>
    %cst_121 = arith.constant 0.000000e+00 : f32
    %342 = arith.mulf %cst_121, %334 : f32
    %343 = arith.mulf %342, %334 : f32
    %344 = arith.subf %341, %343 : f32
    %cst_122 = arith.constant 5.120000e+02 : f32
    %345 = arith.divf %344, %cst_122 : f32
    %cst_123 = arith.constant 0.000000e+00 : f32
    %346 = arith.maximumf %345, %cst_123 : f32
    %cst_124 = arith.constant 9.99999974E-6 : f32
    %347 = arith.addf %346, %cst_124 : f32
    %348 = math.rsqrt %347 : f32
    %349 = vector.broadcast %348 : f32 to vector<8x64xf32>
    %350 = arith.mulf %336, %349 : vector<8x64xf32>
    %c0_125 = arith.constant 0 : index
    %c0_126 = arith.constant 0 : index
    %351 = vector.load %arg15[%c0_125, %c0_126] : memref<8x1xf32, #tpu.memory_space<vmem>>, vector<8x1xf32>
    %352 = vector.broadcast %351 : vector<8x1xf32> to vector<8x64xf32>
    %353 = arith.mulf %350, %352 : vector<8x64xf32>
    %c0_127 = arith.constant 0 : index
    %c0_128 = arith.constant 0 : index
    %354 = vector.load %arg16[%c0_127, %c0_128] : memref<8x1xf32, #tpu.memory_space<vmem>>, vector<8x1xf32>
    %355 = vector.broadcast %354 : vector<8x1xf32> to vector<8x64xf32>
    %356 = arith.addf %353, %355 : vector<8x64xf32>
    %c0_129 = arith.constant 0 : index
    %c0_130 = arith.constant 0 : index
    %c0_131 = arith.constant 0 : index
    %357 = vector.load %arg2[%c0_129, %c0_130, %c0_131] : memref<1x32x1xf32, #tpu.memory_space<vmem>>, vector<1x32x1xf32>
    %358 = vector.shape_cast %357 : vector<1x32x1xf32> to vector<32x1xf32>
    %cst_132 = arith.constant 0.000000e+00 : f32
    %359 = vector.broadcast %cst_132 : f32 to vector<32x1xf32>
    %360 = arith.subf %359, %358 : vector<32x1xf32>
    %361 = math.exp %360 : vector<32x1xf32>
    %cst_133 = arith.constant 1.000000e+00 : f32
    %362 = vector.broadcast %cst_133 : f32 to vector<32x1xf32>
    %363 = arith.addf %362, %361 : vector<32x1xf32>
    %364 = arith.divf %358, %363 : vector<32x1xf32>
    %c0_134 = arith.constant 0 : index
    %c0_135 = arith.constant 0 : index
    %365 = vector.load %arg17[%c0_134, %c0_135] : memref<8x32xf32, #tpu.memory_space<vmem>>, vector<8x32xf32>
    %cst_136 = arith.constant dense<0.000000e+00> : vector<8x1xf32>
    %366 = tpu.matmul %365, %364, %cst_136 {dimension_numbers = #tpu.dot_dimension_numbers<[1], [0], [0], [1], [0, 0, 1, 1], [], []>} : vector<8x32xf32>, vector<32x1xf32>, vector<8x1xf32> -> vector<8x1xf32>
    %c0_137 = arith.constant 0 : index
    %c0_138 = arith.constant 0 : index
    %367 = vector.load %arg18[%c0_137, %c0_138] : memref<8x1xf32, #tpu.memory_space<vmem>>, vector<8x1xf32>
    %368 = arith.addf %366, %367 : vector<8x1xf32>
    %369 = vector.broadcast %368 : vector<8x1xf32> to vector<8x64xf32>
    %370 = arith.addf %356, %369 : vector<8x64xf32>
    %c0_139 = arith.constant 0 : index
    %c0_140 = arith.constant 0 : index
    %c0_141 = arith.constant 0 : index
    %371 = vector.load %arg19[%c0_139, %c0_140, %c0_141] : memref<1x8x64xf32, #tpu.memory_space<vmem>>, vector<1x8x64xf32>
    %372 = vector.shape_cast %371 : vector<1x8x64xf32> to vector<8x64xf32>
    %373 = vector.shape_cast %370 : vector<8x64xf32> to vector<1x8x64xf32>
    tpu.vector_store %arg19[%c0_139, %c0_140, %c0_141], %373 {strides = array<i32>} : memref<1x8x64xf32, #tpu.memory_space<vmem>>, vector<1x8x64xf32>,
    return
  }
  func.func @transform_0(%arg0: i32) -> (i32, i32, i32) {
    %c0_i32 = arith.constant 0 : i32
    %c0_i32_0 = arith.constant 0 : i32
    %c0_i32_1 = arith.constant 0 : i32
    return %arg0, %c0_i32, %c0_i32_0 : i32, i32, i32
  }
  func.func @transform_1(%arg0: i32) -> (i32, i32, i32) {
    %c0_i32 = arith.constant 0 : i32
    %c0_i32_0 = arith.constant 0 : i32
    %c0_i32_1 = arith.constant 0 : i32
    return %arg0, %c0_i32, %c0_i32_0 : i32, i32, i32
  }
  func.func @transform_2(%arg0: i32) -> (i32, i32) {
    %c0_i32 = arith.constant 0 : i32
    %c0_i32_0 = arith.constant 0 : i32
    %c0_i32_1 = arith.constant 0 : i32
    return %c0_i32, %c0_i32_0 : i32, i32
  }
  func.func @transform_3(%arg0: i32) -> (i32, i32) {
    %c0_i32 = arith.constant 0 : i32
    %c0_i32_0 = arith.constant 0 : i32
    %c0_i32_1 = arith.constant 0 : i32
    return %c0_i32, %c0_i32_0 : i32, i32
  }
  func.func @transform_4(%arg0: i32) -> (i32, i32) {
    %c0_i32 = arith.constant 0 : i32
    %c0_i32_0 = arith.constant 0 : i32
    %c0_i32_1 = arith.constant 0 : i32
    return %c0_i32, %c0_i32_0 : i32, i32
  }
  func.func @transform_5(%arg0: i32) -> (i32, i32) {
    %c0_i32 = arith.constant 0 : i32
    %c0_i32_0 = arith.constant 0 : i32
    %c0_i32_1 = arith.constant 0 : i32
    return %c0_i32, %c0_i32_0 : i32, i32
  }
  func.func @transform_6(%arg0: i32) -> (i32, i32) {
    %c0_i32 = arith.constant 0 : i32
    %c0_i32_0 = arith.constant 0 : i32
    %c0_i32_1 = arith.constant 0 : i32
    return %c0_i32, %c0_i32_0 : i32, i32
  }
  func.func @transform_7(%arg0: i32) -> (i32, i32) {
    %c0_i32 = arith.constant 0 : i32
    %c0_i32_0 = arith.constant 0 : i32
    %c0_i32_1 = arith.constant 0 : i32
    return %c0_i32, %c0_i32_0 : i32, i32
  }
  func.func @transform_8(%arg0: i32) -> (i32, i32) {
    %c0_i32 = arith.constant 0 : i32
    %c0_i32_0 = arith.constant 0 : i32
    %c0_i32_1 = arith.constant 0 : i32
    return %c0_i32, %c0_i32_0 : i32, i32
  }
  func.func @transform_9(%arg0: i32) -> (i32, i32) {
    %c0_i32 = arith.constant 0 : i32
    %c0_i32_0 = arith.constant 0 : i32
    %c0_i32_1 = arith.constant 0 : i32
    return %c0_i32, %c0_i32_0 : i32, i32
  }
  func.func @transform_10(%arg0: i32) -> (i32, i32) {
    %c0_i32 = arith.constant 0 : i32
    %c0_i32_0 = arith.constant 0 : i32
    %c0_i32_1 = arith.constant 0 : i32
    return %c0_i32, %c0_i32_0 : i32, i32
  }
  func.func @transform_11(%arg0: i32) -> (i32, i32) {
    %c0_i32 = arith.constant 0 : i32
    %c0_i32_0 = arith.constant 0 : i32
    %c0_i32_1 = arith.constant 0 : i32
    return %c0_i32, %c0_i32_0 : i32, i32
  }
  func.func @transform_12(%arg0: i32) -> (i32, i32) {
    %c0_i32 = arith.constant 0 : i32
    %c0_i32_0 = arith.constant 0 : i32
    %c0_i32_1 = arith.constant 0 : i32
    return %c0_i32, %c0_i32_0 : i32, i32
  }
  func.func @transform_13(%arg0: i32) -> (i32, i32) {
    %c0_i32 = arith.constant 0 : i32
    %c0_i32_0 = arith.constant 0 : i32
    %c0_i32_1 = arith.constant 0 : i32
    return %c0_i32, %c0_i32_0 : i32, i32
  }
  func.func @transform_14(%arg0: i32) -> (i32, i32) {
    %c0_i32 = arith.constant 0 : i32
    %c0_i32_0 = arith.constant 0 : i32
    %c0_i32_1 = arith.constant 0 : i32
    return %c0_i32, %c0_i32_0 : i32, i32
  }
  func.func @transform_15(%arg0: i32) -> (i32, i32) {
    %c0_i32 = arith.constant 0 : i32
    %c0_i32_0 = arith.constant 0 : i32
    %c0_i32_1 = arith.constant 0 : i32
    return %c0_i32, %c0_i32_0 : i32, i32
  }
  func.func @transform_16(%arg0: i32) -> (i32, i32) {
    %c0_i32 = arith.constant 0 : i32
    %c0_i32_0 = arith.constant 0 : i32
    %c0_i32_1 = arith.constant 0 : i32
    return %c0_i32, %c0_i32_0 : i32, i32
  }
  func.func @transform_17(%arg0: i32) -> (i32, i32) {
    %c0_i32 = arith.constant 0 : i32
    %c0_i32_0 = arith.constant 0 : i32
    %c0_i32_1 = arith.constant 0 : i32
    return %c0_i32, %c0_i32_0 : i32, i32
  }
  func.func @transform_18(%arg0: i32) -> (i32, i32, i32) {
    %c0_i32 = arith.constant 0 : i32
    %c0_i32_0 = arith.constant 0 : i32
    %c0_i32_1 = arith.constant 0 : i32
    return %arg0, %c0_i32, %c0_i32_0 : i32, i32, i32
  }
}

</mosaic_0001>

<llo_original>
// kernel: down_forward.1
$region0: #{down_forward.1}
  #allocation0 [shape = 'u32[]', space=smem, size = 0x4, offset = 0x4, fixed_abs, tag = 'smem constant byte address 0x4 - core index']
  #allocation1 [shape = 'u32[72,128]{1,0:T(1,128)}', space=vmem, size = 0x9000, scoped, tag = 'internal scratch']
  %s0 = inlined_call_operand.vmem [shape: f32[2,4,256], index: 0, kind: input, shape index: {}]
  %s1 = inlined_call_operand.vmem [shape: f32[2,32,1], index: 1, kind: input, shape index: {}]
  %s2 = inlined_call_operand.vmem [shape: f32[256,64], index: 2, kind: input, shape index: {}]
  %s3 = inlined_call_operand.vmem [shape: f32[9,64], index: 3, kind: input, shape index: {}]
  %s4 = inlined_call_operand.vmem [shape: f32[8,72], index: 4, kind: input, shape index: {}]
  %s5 = inlined_call_operand.vmem [shape: f32[8,1], index: 5, kind: input, shape index: {}]
  %s6 = inlined_call_operand.vmem [shape: f32[8,1], index: 6, kind: input, shape index: {}]
  %s7 = inlined_call_operand.vmem [shape: f32[8,72], index: 7, kind: input, shape index: {}]
  %s8 = inlined_call_operand.vmem [shape: f32[8,1], index: 8, kind: input, shape index: {}]
  %s9 = inlined_call_operand.vmem [shape: f32[8,1], index: 9, kind: input, shape index: {}]
  %s10 = inlined_call_operand.vmem [shape: f32[8,72], index: 10, kind: input, shape index: {}]
  %s11 = inlined_call_operand.vmem [shape: f32[8,1], index: 11, kind: input, shape index: {}]
  %s12 = inlined_call_operand.vmem [shape: f32[8,1], index: 12, kind: input, shape index: {}]
  %s13 = inlined_call_operand.vmem [shape: f32[8,72], index: 13, kind: input, shape index: {}]
  %s14 = inlined_call_operand.vmem [shape: f32[8,1], index: 14, kind: input, shape index: {}]
  %s15 = inlined_call_operand.vmem [shape: f32[8,1], index: 15, kind: input, shape index: {}]
  %s16 = inlined_call_operand.vmem [shape: f32[8,32], index: 16, kind: input, shape index: {}]
  %s17 = inlined_call_operand.vmem [shape: f32[8,1], index: 17, kind: input, shape index: {}]
  %s18 = inlined_call_operand.vmem [shape: f32[2,8,64], index: 18, kind: output, shape index: {}]
  %s19 = sld [smem:[#allocation0]]
  $region105: #{down_forward.1} parent=0
    _
  %s21 = ssub.s32 1, %s19
  %s22 = scalar_select 0, %s21, %s19
  loop: start=0, step=1, limit=4
  $region2: #{down_forward.1} parent=0 // loop_pre_header
    _
  $region3: #{down_forward.1} parent=0 // loop_header
    %s24 = sphi 0, %s28
    %p25 = scmp.ge.s32.totalorder %s24, 4
    %s34 = sphi 0, %s36
    %s37 = sphi 0, %s34
    %s38 = sphi 0, %s37
    %s54 = sphi 0, %s38
    %s60 = sphi 0, %s62
    %s63 = sphi 0, %s60
    %s64 = sphi 0, %s63
    %s80 = sphi 0, %s64
    %s84 = sphi 0, %s84
    %s86 = sphi 0, %s84
    %s87 = sphi 0, %s86
    %s101 = sphi 0, %s87
    %s105 = sphi 0, %s105
    %s107 = sphi 0, %s105
    %s108 = sphi 0, %s107
    %s122 = sphi 0, %s108
    %s126 = sphi 0, %s126
    %s128 = sphi 0, %s126
    %s129 = sphi 0, %s128
    %s143 = sphi 0, %s129
    %s147 = sphi 0, %s147
    %s149 = sphi 0, %s147
    %s150 = sphi 0, %s149
    %s164 = sphi 0, %s150
    %s168 = sphi 0, %s168
    %s170 = sphi 0, %s168
    %s171 = sphi 0, %s170
    %s185 = sphi 0, %s171
    %s189 = sphi 0, %s189
    %s191 = sphi 0, %s189
    %s192 = sphi 0, %s191
    %s206 = sphi 0, %s192
    %s210 = sphi 0, %s210
    %s212 = sphi 0, %s210
    %s213 = sphi 0, %s212
    %s227 = sphi 0, %s213
    %s231 = sphi 0, %s231
    %s233 = sphi 0, %s231
    %s234 = sphi 0, %s233
    %s248 = sphi 0, %s234
    %s252 = sphi 0, %s252
    %s254 = sphi 0, %s252
    %s255 = sphi 0, %s254
    %s269 = sphi 0, %s255
    %s273 = sphi 0, %s273
    %s275 = sphi 0, %s273
    %s276 = sphi 0, %s275
    %s290 = sphi 0, %s276
    %s294 = sphi 0, %s294
    %s296 = sphi 0, %s294
    %s297 = sphi 0, %s296
    %s311 = sphi 0, %s297
    %s315 = sphi 0, %s315
    %s317 = sphi 0, %s315
    %s318 = sphi 0, %s317
    %s332 = sphi 0, %s318
    %s336 = sphi 0, %s336
    %s338 = sphi 0, %s336
    %s339 = sphi 0, %s338
    %s353 = sphi 0, %s339
    %s357 = sphi 0, %s357
    %s359 = sphi 0, %s357
    %s360 = sphi 0, %s359
    %s374 = sphi 0, %s360
    %s378 = sphi 0, %s378
    %s380 = sphi 0, %s378
    %s381 = sphi 0, %s380
    %s395 = sphi 0, %s381
    %s399 = sphi 0, %s399
    %s401 = sphi 0, %s399
    %s402 = sphi 0, %s401
    %s416 = sphi 0, %s402
    %s422 = sphi 0, %s424
    %s425 = sphi 0, %s422
    %s426 = sphi 0, %s425
    %s442 = sphi 0, %s426
  $region4: #{down_forward.1} parent=0 // loop_header_branch
    %27 = sbr.rel (%p25) target = $region8
  $region5: #{down_forward.1} parent=0 // loop_body
    %s29 = ssub.s32 %s24, 1
    %s30 = ssub.s32 %s24, 2
    %s31 = sadd.s32 %s24, 1
    %s32 = ssub.s32 %s24, %s31
    %p33 = scmp.eq.s32.totalorder %s32, 0
    %s35 = sadd.s32 %s34, 1
    %s36 = scalar_select %p33, %s34, %s35
    %p39 = pneg %p33
    %p40 = scmp.eq.s32.totalorder %s24, 1
    %p41 = por %p39, %p40
    %p42 = scmp.ne.s32.totalorder %s34, %s37
    %p43 = scmp.eq.s32.totalorder %s24, 0
    %p44 = por %p42, %p43
    %p45 = scmp.ne.s32.totalorder %s34, %s37
    %p46 = scmp.eq.s32.totalorder %s29, 1
    %p47 = por %p45, %p46
    %p48 = scmp.ne.s32.totalorder %s37, %s38
    %p49 = scmp.eq.s32.totalorder %s29, 0
    %p50 = por %p48, %p49
    %p51 = scmp.ne.s32.totalorder %s37, %s38
    %p52 = scmp.eq.s32.totalorder %s30, 1
    %p53 = por %p51, %p52
    %p55 = scmp.ne.s32.totalorder %s38, %s54
    %p56 = scmp.eq.s32.totalorder %s30, 0
    %p57 = por %p55, %p56
    %s58 = ssub.s32 %s24, %s31
    %p59 = scmp.eq.s32.totalorder %s58, 0
    %s61 = sadd.s32 %s60, 1
    %s62 = scalar_select %p59, %s60, %s61
    %p65 = pneg %p59
    %p66 = scmp.eq.s32.totalorder %s24, 1
    %p67 = por %p65, %p66
    %p68 = scmp.ne.s32.totalorder %s60, %s63
    %p69 = scmp.eq.s32.totalorder %s24, 0
    %p70 = por %p68, %p69
    %p71 = scmp.ne.s32.totalorder %s60, %s63
    %p72 = scmp.eq.s32.totalorder %s29, 1
    %p73 = por %p71, %p72
    %p74 = scmp.ne.s32.totalorder %s63, %s64
    %p75 = scmp.eq.s32.totalorder %s29, 0
    %p76 = por %p74, %p75
    %p77 = scmp.ne.s32.totalorder %s63, %s64
    %p78 = scmp.eq.s32.totalorder %s30, 1
    %p79 = por %p77, %p78
    %p81 = scmp.ne.s32.totalorder %s64, %s80
    %p82 = scmp.eq.s32.totalorder %s30, 0
    %p83 = por %p81, %p82
    %s85 = sadd.s32 %s84, 1
    %p88 = scmp.eq.s32.totalorder %s24, 1
    %p89 = scmp.ne.s32.totalorder %s84, %s86
    %p90 = scmp.eq.s32.totalorder %s24, 0
    %p91 = por %p89, %p90
    %p92 = scmp.ne.s32.totalorder %s84, %s86
    %p93 = scmp.eq.s32.totalorder %s29, 1
    %p94 = por %p92, %p93
    %p95 = scmp.ne.s32.totalorder %s86, %s87
    %p96 = scmp.eq.s32.totalorder %s29, 0
    %p97 = por %p95, %p96
    %p98 = scmp.ne.s32.totalorder %s86, %s87
    %p99 = scmp.eq.s32.totalorder %s30, 1
    %p100 = por %p98, %p99
    %p102 = scmp.ne.s32.totalorder %s87, %s101
    %p103 = scmp.eq.s32.totalorder %s30, 0
    %p104 = por %p102, %p103
    %s106 = sadd.s32 %s105, 1
    %p109 = scmp.eq.s32.totalorder %s24, 1
    %p110 = scmp.ne.s32.totalorder %s105, %s107
    %p111 = scmp.eq.s32.totalorder %s24, 0
    %p112 = por %p110, %p111
    %p113 = scmp.ne.s32.totalorder %s105, %s107
    %p114 = scmp.eq.s32.totalorder %s29, 1
    %p115 = por %p113, %p114
    %p116 = scmp.ne.s32.totalorder %s107, %s108
    %p117 = scmp.eq.s32.totalorder %s29, 0
    %p118 = por %p116, %p117
    %p119 = scmp.ne.s32.totalorder %s107, %s108
    %p120 = scmp.eq.s32.totalorder %s30, 1
    %p121 = por %p119, %p120
    %p123 = scmp.ne.s32.totalorder %s108, %s122
    %p124 = scmp.eq.s32.totalorder %s30, 0
    %p125 = por %p123, %p124
    %s127 = sadd.s32 %s126, 1
    %p130 = scmp.eq.s32.totalorder %s24, 1
    %p131 = scmp.ne.s32.totalorder %s126, %s128
    %p132 = scmp.eq.s32.totalorder %s24, 0
    %p133 = por %p131, %p132
    %p134 = scmp.ne.s32.totalorder %s126, %s128
    %p135 = scmp.eq.s32.totalorder %s29, 1
    %p136 = por %p134, %p135
    %p137 = scmp.ne.s32.totalorder %s128, %s129
    %p138 = scmp.eq.s32.totalorder %s29, 0
    %p139 = por %p137, %p138
    %p140 = scmp.ne.s32.totalorder %s128, %s129
    %p141 = scmp.eq.s32.totalorder %s30, 1
    %p142 = por %p140, %p141
    %p144 = scmp.ne.s32.totalorder %s129, %s143
    %p145 = scmp.eq.s32.totalorder %s30, 0
    %p146 = por %p144, %p145
    %s148 = sadd.s32 %s147, 1
    %p151 = scmp.eq.s32.totalorder %s24, 1
    %p152 = scmp.ne.s32.totalorder %s147, %s149
    %p153 = scmp.eq.s32.totalorder %s24, 0
    %p154 = por %p152, %p153
    %p155 = scmp.ne.s32.totalorder %s147, %s149
    %p156 = scmp.eq.s32.totalorder %s29, 1
    %p157 = por %p155, %p156
    %p158 = scmp.ne.s32.totalorder %s149, %s150
    %p159 = scmp.eq.s32.totalorder %s29, 0
    %p160 = por %p158, %p159
    %p161 = scmp.ne.s32.totalorder %s149, %s150
    %p162 = scmp.eq.s32.totalorder %s30, 1
    %p163 = por %p161, %p162
    %p165 = scmp.ne.s32.totalorder %s150, %s164
    %p166 = scmp.eq.s32.totalorder %s30, 0
    %p167 = por %p165, %p166
    %s169 = sadd.s32 %s168, 1
    %p172 = scmp.eq.s32.totalorder %s24, 1
    %p173 = scmp.ne.s32.totalorder %s168, %s170
    %p174 = scmp.eq.s32.totalorder %s24, 0
    %p175 = por %p173, %p174
    %p176 = scmp.ne.s32.totalorder %s168, %s170
    %p177 = scmp.eq.s32.totalorder %s29, 1
    %p178 = por %p176, %p177
    %p179 = scmp.ne.s32.totalorder %s170, %s171
    %p180 = scmp.eq.s32.totalorder %s29, 0
    %p181 = por %p179, %p180
    %p182 = scmp.ne.s32.totalorder %s170, %s171
    %p183 = scmp.eq.s32.totalorder %s30, 1
    %p184 = por %p182, %p183
    %p186 = scmp.ne.s32.totalorder %s171, %s185
    %p187 = scmp.eq.s32.totalorder %s30, 0
    %p188 = por %p186, %p187
    %s190 = sadd.s32 %s189, 1
    %p193 = scmp.eq.s32.totalorder %s24, 1
    %p194 = scmp.ne.s32.totalorder %s189, %s191
    %p195 = scmp.eq.s32.totalorder %s24, 0
    %p196 = por %p194, %p195
    %p197 = scmp.ne.s32.totalorder %s189, %s191
    %p198 = scmp.eq.s32.totalorder %s29, 1
    %p199 = por %p197, %p198
    %p200 = scmp.ne.s32.totalorder %s191, %s192
    %p201 = scmp.eq.s32.totalorder %s29, 0
    %p202 = por %p200, %p201
    %p203 = scmp.ne.s32.totalorder %s191, %s192
    %p204 = scmp.eq.s32.totalorder %s30, 1
    %p205 = por %p203, %p204
    %p207 = scmp.ne.s32.totalorder %s192, %s206
    %p208 = scmp.eq.s32.totalorder %s30, 0
    %p209 = por %p207, %p208
    %s211 = sadd.s32 %s210, 1
    %p214 = scmp.eq.s32.totalorder %s24, 1
    %p215 = scmp.ne.s32.totalorder %s210, %s212
    %p216 = scmp.eq.s32.totalorder %s24, 0
    %p217 = por %p215, %p216
    %p218 = scmp.ne.s32.totalorder %s210, %s212
    %p219 = scmp.eq.s32.totalorder %s29, 1
    %p220 = por %p218, %p219
    %p221 = scmp.ne.s32.totalorder %s212, %s213
    %p222 = scmp.eq.s32.totalorder %s29, 0
    %p223 = por %p221, %p222
    %p224 = scmp.ne.s32.totalorder %s212, %s213
    %p225 = scmp.eq.s32.totalorder %s30, 1
    %p226 = por %p224, %p225
    %p228 = scmp.ne.s32.totalorder %s213, %s227
    %p229 = scmp.eq.s32.totalorder %s30, 0
    %p230 = por %p228, %p229
    %s232 = sadd.s32 %s231, 1
    %p235 = scmp.eq.s32.totalorder %s24, 1
    %p236 = scmp.ne.s32.totalorder %s231, %s233
    %p237 = scmp.eq.s32.totalorder %s24, 0
    %p238 = por %p236, %p237
    %p239 = scmp.ne.s32.totalorder %s231, %s233
    %p240 = scmp.eq.s32.totalorder %s29, 1
    %p241 = por %p239, %p240
    %p242 = scmp.ne.s32.totalorder %s233, %s234
    %p243 = scmp.eq.s32.totalorder %s29, 0
    %p244 = por %p242, %p243
    %p245 = scmp.ne.s32.totalorder %s233, %s234
    %p246 = scmp.eq.s32.totalorder %s30, 1
    %p247 = por %p245, %p246
    %p249 = scmp.ne.s32.totalorder %s234, %s248
    %p250 = scmp.eq.s32.totalorder %s30, 0
    %p251 = por %p249, %p250
    %s253 = sadd.s32 %s252, 1
    %p256 = scmp.eq.s32.totalorder %s24, 1
    %p257 = scmp.ne.s32.totalorder %s252, %s254
    %p258 = scmp.eq.s32.totalorder %s24, 0
    %p259 = por %p257, %p258
    %p260 = scmp.ne.s32.totalorder %s252, %s254
    %p261 = scmp.eq.s32.totalorder %s29, 1
    %p262 = por %p260, %p261
    %p263 = scmp.ne.s32.totalorder %s254, %s255
    %p264 = scmp.eq.s32.totalorder %s29, 0
    %p265 = por %p263, %p264
    %p266 = scmp.ne.s32.totalorder %s254, %s255
    %p267 = scmp.eq.s32.totalorder %s30, 1
    %p268 = por %p266, %p267
    %p270 = scmp.ne.s32.totalorder %s255, %s269
    %p271 = scmp.eq.s32.totalorder %s30, 0
    %p272 = por %p270, %p271
    %s274 = sadd.s32 %s273, 1
    %p277 = scmp.eq.s32.totalorder %s24, 1
    %p278 = scmp.ne.s32.totalorder %s273, %s275
    %p279 = scmp.eq.s32.totalorder %s24, 0
    %p280 = por %p278, %p279
    %p281 = scmp.ne.s32.totalorder %s273, %s275
    %p282 = scmp.eq.s32.totalorder %s29, 1
    %p283 = por %p281, %p282
    %p284 = scmp.ne.s32.totalorder %s275, %s276
    %p285 = scmp.eq.s32.totalorder %s29, 0
    %p286 = por %p284, %p285
    %p287 = scmp.ne.s32.totalorder %s275, %s276
    %p288 = scmp.eq.s32.totalorder %s30, 1
    %p289 = por %p287, %p288
    %p291 = scmp.ne.s32.totalorder %s276, %s290
    %p292 = scmp.eq.s32.totalorder %s30, 0
    %p293 = por %p291, %p292
    %s295 = sadd.s32 %s294, 1
    %p298 = scmp.eq.s32.totalorder %s24, 1
    %p299 = scmp.ne.s32.totalorder %s294, %s296
    %p300 = scmp.eq.s32.totalorder %s24, 0
    %p301 = por %p299, %p300
    %p302 = scmp.ne.s32.totalorder %s294, %s296
    %p303 = scmp.eq.s32.totalorder %s29, 1
    %p304 = por %p302, %p303
    %p305 = scmp.ne.s32.totalorder %s296, %s297
    %p306 = scmp.eq.s32.totalorder %s29, 0
    %p307 = por %p305, %p306
    %p308 = scmp.ne.s32.totalorder %s296, %s297
    %p309 = scmp.eq.s32.totalorder %s30, 1
    %p310 = por %p308, %p309
    %p312 = scmp.ne.s32.totalorder %s297, %s311
    %p313 = scmp.eq.s32.totalorder %s30, 0
    %p314 = por %p312, %p313
    %s316 = sadd.s32 %s315, 1
    %p319 = scmp.eq.s32.totalorder %s24, 1
    %p320 = scmp.ne.s32.totalorder %s315, %s317
    %p321 = scmp.eq.s32.totalorder %s24, 0
    %p322 = por %p320, %p321
    %p323 = scmp.ne.s32.totalorder %s315, %s317
    %p324 = scmp.eq.s32.totalorder %s29, 1
    %p325 = por %p323, %p324
    %p326 = scmp.ne.s32.totalorder %s317, %s318
    %p327 = scmp.eq.s32.totalorder %s29, 0
    %p328 = por %p326, %p327
    %p329 = scmp.ne.s32.totalorder %s317, %s318
    %p330 = scmp.eq.s32.totalorder %s30, 1
    %p331 = por %p329, %p330
    %p333 = scmp.ne.s32.totalorder %s318, %s332
    %p334 = scmp.eq.s32.totalorder %s30, 0
    %p335 = por %p333, %p334
    %s337 = sadd.s32 %s336, 1
    %p340 = scmp.eq.s32.totalorder %s24, 1
    %p341 = scmp.ne.s32.totalorder %s336, %s338
    %p342 = scmp.eq.s32.totalorder %s24, 0
    %p343 = por %p341, %p342
    %p344 = scmp.ne.s32.totalorder %s336, %s338
    %p345 = scmp.eq.s32.totalorder %s29, 1
    %p346 = por %p344, %p345
    %p347 = scmp.ne.s32.totalorder %s338, %s339
    %p348 = scmp.eq.s32.totalorder %s29, 0
    %p349 = por %p347, %p348
    %p350 = scmp.ne.s32.totalorder %s338, %s339
    %p351 = scmp.eq.s32.totalorder %s30, 1
    %p352 = por %p350, %p351
    %p354 = scmp.ne.s32.totalorder %s339, %s353
    %p355 = scmp.eq.s32.totalorder %s30, 0
    %p356 = por %p354, %p355
    %s358 = sadd.s32 %s357, 1
    %p361 = scmp.eq.s32.totalorder %s24, 1
    %p362 = scmp.ne.s32.totalorder %s357, %s359
    %p363 = scmp.eq.s32.totalorder %s24, 0
    %p364 = por %p362, %p363
    %p365 = scmp.ne.s32.totalorder %s357, %s359
    %p366 = scmp.eq.s32.totalorder %s29, 1
    %p367 = por %p365, %p366
    %p368 = scmp.ne.s32.totalorder %s359, %s360
    %p369 = scmp.eq.s32.totalorder %s29, 0
    %p370 = por %p368, %p369
    %p371 = scmp.ne.s32.totalorder %s359, %s360
    %p372 = scmp.eq.s32.totalorder %s30, 1
    %p373 = por %p371, %p372
    %p375 = scmp.ne.s32.totalorder %s360, %s374
    %p376 = scmp.eq.s32.totalorder %s30, 0
    %p377 = por %p375, %p376
    %s379 = sadd.s32 %s378, 1
    %p382 = scmp.eq.s32.totalorder %s24, 1
    %p383 = scmp.ne.s32.totalorder %s378, %s380
    %p384 = scmp.eq.s32.totalorder %s24, 0
    %p385 = por %p383, %p384
    %p386 = scmp.ne.s32.totalorder %s378, %s380
    %p387 = scmp.eq.s32.totalorder %s29, 1
    %p388 = por %p386, %p387
    %p389 = scmp.ne.s32.totalorder %s380, %s381
    %p390 = scmp.eq.s32.totalorder %s29, 0
    %p391 = por %p389, %p390
    %p392 = scmp.ne.s32.totalorder %s380, %s381
    %p393 = scmp.eq.s32.totalorder %s30, 1
    %p394 = por %p392, %p393
    %p396 = scmp.ne.s32.totalorder %s381, %s395
    %p397 = scmp.eq.s32.totalorder %s30, 0
    %p398 = por %p396, %p397
    %s400 = sadd.s32 %s399, 1
    %p403 = scmp.eq.s32.totalorder %s24, 1
    %p404 = scmp.ne.s32.totalorder %s399, %s401
    %p405 = scmp.eq.s32.totalorder %s24, 0
    %p406 = por %p404, %p405
    %p407 = scmp.ne.s32.totalorder %s399, %s401
    %p408 = scmp.eq.s32.totalorder %s29, 1
    %p409 = por %p407, %p408
    %p410 = scmp.ne.s32.totalorder %s401, %s402
    %p411 = scmp.eq.s32.totalorder %s29, 0
    %p412 = por %p410, %p411
    %p413 = scmp.ne.s32.totalorder %s401, %s402
    %p414 = scmp.eq.s32.totalorder %s30, 1
    %p415 = por %p413, %p414
    %p417 = scmp.ne.s32.totalorder %s402, %s416
    %p418 = scmp.eq.s32.totalorder %s30, 0
    %p419 = por %p417, %p418
    %s420 = ssub.s32 %s24, %s31
    %p421 = scmp.eq.s32.totalorder %s420, 0
    %s423 = sadd.s32 %s422, 1
    %s424 = scalar_select %p421, %s422, %s423
    %p427 = pneg %p421
    %p428 = scmp.eq.s32.totalorder %s24, 1
    %p429 = por %p427, %p428
    %p430 = scmp.ne.s32.totalorder %s422, %s425
    %p431 = scmp.eq.s32.totalorder %s24, 0
    %p432 = por %p430, %p431
    %p433 = scmp.ne.s32.totalorder %s422, %s425
    %p434 = scmp.eq.s32.totalorder %s29, 1
    %p435 = por %p433, %p434
    %p436 = scmp.ne.s32.totalorder %s425, %s426
    %p437 = scmp.eq.s32.totalorder %s29, 0
    %p438 = por %p436, %p437
    %p439 = scmp.ne.s32.totalorder %s425, %s426
    %p440 = scmp.eq.s32.totalorder %s30, 1
    %p441 = por %p439, %p440
    %p443 = scmp.ne.s32.totalorder %s426, %s442
    %p444 = scmp.eq.s32.totalorder %s30, 0
    %p445 = por %p443, %p444
    %p446 = scmp.le.s32.totalorder 1, %s24
    %p447 = scmp.lt.s32.totalorder %s24, 3
    %p448 = pnand %p446, %p447
    %p449 = pneg %p448
    // Predicated region
    $region9: #{down_forward.1} parent=5 // pred_check
      _
    $region10: #{down_forward.1} parent=5 // pred_check_branch
      %451 = sbr.rel (%p448) target = $region12
    $region11: #{down_forward.1} parent=5 // pred_region
      %s452 = ssub.s32 %s24, 1
      // Predicated region
      $region13: #{down_forward.1} parent=11 // pred_check
        %p453 = pneg %p97
      $region14: #{down_forward.1} parent=11 // pred_check_branch
        %455 = sbr.rel (%p453) target = $region16
      $region15: #{down_forward.1} parent=11 // pred_region
        _
      $region16: #{down_forward.1} parent=11 // pred_fallthru
        _
      // Predicated region
      $region17: #{down_forward.1} parent=11 // pred_check
        %p456 = pneg %p118
      $region18: #{down_forward.1} parent=11 // pred_check_branch
        %458 = sbr.rel (%p456) target = $region20
      $region19: #{down_forward.1} parent=11 // pred_region
        _
      $region20: #{down_forward.1} parent=11 // pred_fallthru
        _
      // Predicated region
      $region21: #{down_forward.1} parent=11 // pred_check
        %p459 = pneg %p139
      $region22: #{down_forward.1} parent=11 // pred_check_branch
        %461 = sbr.rel (%p459) target = $region24
      $region23: #{down_forward.1} parent=11 // pred_region
        _
      $region24: #{down_forward.1} parent=11 // pred_fallthru
        _
      // Predicated region
      $region25: #{down_forward.1} parent=11 // pred_check
        %p462 = pneg %p160
      $region26: #{down_forward.1} parent=11 // pred_check_branch
        %464 = sbr.rel (%p462) target = $region28
      $region27: #{down_forward.1} parent=11 // pred_region
        _
      $region28: #{down_forward.1} parent=11 // pred_fallthru
        _
      // Predicated region
      $region29: #{down_forward.1} parent=11 // pred_check
        %p465 = pneg %p181
      $region30: #{down_forward.1} parent=11 // pred_check_branch
        %467 = sbr.rel (%p465) target = $region32
      $region31: #{down_forward.1} parent=11 // pred_region
        _
      $region32: #{down_forward.1} parent=11 // pred_fallthru
        _
      // Predicated region
      $region33: #{down_forward.1} parent=11 // pred_check
        %p468 = pneg %p202
      $region34: #{down_forward.1} parent=11 // pred_check_branch
        %470 = sbr.rel (%p468) target = $region36
      $region35: #{down_forward.1} parent=11 // pred_region
        _
      $region36: #{down_forward.1} parent=11 // pred_fallthru
        _
      // Predicated region
      $region37: #{down_forward.1} parent=11 // pred_check
        %p471 = pneg %p223
      $region38: #{down_forward.1} parent=11 // pred_check_branch
        %473 = sbr.rel (%p471) target = $region40
      $region39: #{down_forward.1} parent=11 // pred_region
        _
      $region40: #{down_forward.1} parent=11 // pred_fallthru
        _
      // Predicated region
      $region41: #{down_forward.1} parent=11 // pred_check
        %p474 = pneg %p244
      $region42: #{down_forward.1} parent=11 // pred_check_branch
        %476 = sbr.rel (%p474) target = $region44
      $region43: #{down_forward.1} parent=11 // pred_region
        _
      $region44: #{down_forward.1} parent=11 // pred_fallthru
        _
      // Predicated region
      $region45: #{down_forward.1} parent=11 // pred_check
        %p477 = pneg %p265
      $region46: #{down_forward.1} parent=11 // pred_check_branch
        %479 = sbr.rel (%p477) target = $region48
      $region47: #{down_forward.1} parent=11 // pred_region
        _
      $region48: #{down_forward.1} parent=11 // pred_fallthru
        _
      // Predicated region
      $region49: #{down_forward.1} parent=11 // pred_check
        %p480 = pneg %p286
      $region50: #{down_forward.1} parent=11 // pred_check_branch
        %482 = sbr.rel (%p480) target = $region52
      $region51: #{down_forward.1} parent=11 // pred_region
        _
      $region52: #{down_forward.1} parent=11 // pred_fallthru
        _
      // Predicated region
      $region53: #{down_forward.1} parent=11 // pred_check
        %p483 = pneg %p307
      $region54: #{down_forward.1} parent=11 // pred_check_branch
        %485 = sbr.rel (%p483) target = $region56
      $region55: #{down_forward.1} parent=11 // pred_region
        _
      $region56: #{down_forward.1} parent=11 // pred_fallthru
        _
      // Predicated region
      $region57: #{down_forward.1} parent=11 // pred_check
        %p486 = pneg %p328
      $region58: #{down_forward.1} parent=11 // pred_check_branch
        %488 = sbr.rel (%p486) target = $region60
      $region59: #{down_forward.1} parent=11 // pred_region
        _
      $region60: #{down_forward.1} parent=11 // pred_fallthru
        _
      // Predicated region
      $region61: #{down_forward.1} parent=11 // pred_check
        %p489 = pneg %p349
      $region62: #{down_forward.1} parent=11 // pred_check_branch
        %491 = sbr.rel (%p489) target = $region64
      $region63: #{down_forward.1} parent=11 // pred_region
        _
      $region64: #{down_forward.1} parent=11 // pred_fallthru
        _
      // Predicated region
      $region65: #{down_forward.1} parent=11 // pred_check
        %p492 = pneg %p370
      $region66: #{down_forward.1} parent=11 // pred_check_branch
        %494 = sbr.rel (%p492) target = $region68
      $region67: #{down_forward.1} parent=11 // pred_region
        _
      $region68: #{down_forward.1} parent=11 // pred_fallthru
        _
      // Predicated region
      $region69: #{down_forward.1} parent=11 // pred_check
        %p495 = pneg %p391
      $region70: #{down_forward.1} parent=11 // pred_check_branch
        %497 = sbr.rel (%p495) target = $region72
      $region71: #{down_forward.1} parent=11 // pred_region
        _
      $region72: #{down_forward.1} parent=11 // pred_fallthru
        _
      // Predicated region
      $region73: #{down_forward.1} parent=11 // pred_check
        %p498 = pneg %p412
      $region74: #{down_forward.1} parent=11 // pred_check_branch
        %500 = sbr.rel (%p498) target = $region76
      $region75: #{down_forward.1} parent=11 // pred_region
        _
      $region76: #{down_forward.1} parent=11 // pred_fallthru
        _
    $region12: #{down_forward.1} parent=5 // pred_fallthru
      _
    %p501 = scmp.lt.s32.totalorder %s24, 2
    // Predicated region
    $region77: #{down_forward.1} parent=5 // pred_check
      %p502 = pneg %p501
    $region78: #{down_forward.1} parent=5 // pred_check_branch
      %504 = sbr.rel (%p502) target = $region80
    $region79: #{down_forward.1} parent=5 // pred_region
      // Predicated region
      $region81: #{down_forward.1} parent=79 // pred_check
        %p505 = pneg %p44
      $region82: #{down_forward.1} parent=79 // pred_check_branch
        %507 = sbr.rel (%p505) target = $region84
      $region83: #{down_forward.1} parent=79 // pred_region
        %p508 = scmp.lt.s32.totalorder %s24, 1
        %s509 = scalar_select %p508, %s24, 1
        %s510 = smul.addr %s509, 2
        %s511 = smul.addr %s510, 4
        %s512 = scalar_lea.vmem %s0, %s511
      $region84: #{down_forward.1} parent=79 // pred_fallthru
        _
      // Predicated region
      $region85: #{down_forward.1} parent=79 // pred_check
        %p513 = pneg %p70
      $region86: #{down_forward.1} parent=79 // pred_check_branch
        %515 = sbr.rel (%p513) target = $region88
      $region87: #{down_forward.1} parent=79 // pred_region
        %p516 = scmp.lt.s32.totalorder %s24, 1
        %s517 = scalar_select %p516, %s24, 1
        %s518 = smul.addr %s517, 4
        %s519 = smul.addr %s518, 8
        %s520 = scalar_lea.vmem %s1, %s519
      $region88: #{down_forward.1} parent=79 // pred_fallthru
        _
    $region80: #{down_forward.1} parent=5 // pred_fallthru
      _
    %p521 = scmp.le.s32.totalorder 1, %s24
    %p522 = scmp.lt.s32.totalorder %s24, 3
    %p523 = pnand %p521, %p522
    %p524 = pneg %p523
    // Predicated region
    $region89: #{down_forward.1} parent=5 // pred_check
      _
    $region90: #{down_forward.1} parent=5 // pred_check_branch
      %526 = sbr.rel (%p523) target = $region92
    $region91: #{down_forward.1} parent=5 // pred_region
      %s527 = ssub.s32 %s24, 1
      %p528 = scmp.lt.s32.totalorder %s29, 1
      %s529 = scalar_select %p528, %s29, 1
      %s530 = smul.addr %s529, 2
      %s531 = smul.addr %s530, 4
      %s532 = scalar_lea.vmem %s0, %s531
      %p533 = pneg %p50
      %p534 = pneg %p47
      %p535 = scmp.lt.s32.totalorder %s29, 1
      %s536 = scalar_select %p535, %s29, 1
      %s537 = smul.addr %s536, 4
      %s538 = smul.addr %s537, 8
      %s539 = scalar_lea.vmem %s1, %s538
      %p540 = pneg %p76
      %p541 = pneg %p73
      %p542 = pneg %p97
      %p543 = pneg %p94
      %p544 = pneg %p118
      %p545 = pneg %p115
      %p546 = pneg %p139
      %p547 = pneg %p136
      %p548 = pneg %p160
      %p549 = pneg %p157
      %p550 = pneg %p181
      %p551 = pneg %p178
      %p552 = pneg %p202
      %p553 = pneg %p199
      %p554 = pneg %p223
      %p555 = pneg %p220
      %p556 = pneg %p244
      %p557 = pneg %p241
      %p558 = pneg %p265
      %p559 = pneg %p262
      %p560 = pneg %p286
      %p561 = pneg %p283
      %p562 = pneg %p307
      %p563 = pneg %p304
      %p564 = pneg %p328
      %p565 = pneg %p325
      %p566 = pneg %p349
      %p567 = pneg %p346
      %p568 = pneg %p370
      %p569 = pneg %p367
      %p570 = pneg %p391
      %p571 = pneg %p388
      %p572 = pneg %p412
      %p573 = pneg %p409
      %p574 = pneg %p438
      %p575 = pneg %p435
      %p576 = scmp.lt.s32.totalorder %s29, 1
      %s577 = scalar_select %p576, %s29, 1
      %s578 = smul.addr %s577, 8
      %s579 = scalar_lea.vmem %s18, %s578
      %p580 = scmp.lt.s32.totalorder %s29, 1
      %s581 = scalar_select %p580, %s29, 1
      %s582 = smul.addr %s581, 2
      %s583 = smul.addr %s582, 4
      %s584 = scalar_lea.vmem %s0, %s583
      %p585 = scmp.lt.s32.totalorder %s29, 1
      %s586 = scalar_select %p585, %s29, 1
      %s587 = smul.addr %s586, 4
      %s588 = smul.addr %s587, 8
      %s589 = scalar_lea.vmem %s1, %s588
      %p590 = scmp.lt.s32.totalorder %s29, 1
      %s591 = scalar_select %p590, %s29, 1
      %s592 = smul.addr %s591, 8
      %s593 = scalar_lea.vmem %s18, %s592
      %v594 = vld [vmem:[%s584] sm:$0xff]
      %v595 = vlaneseq
      %v596 = vshrl.u32 %v595, 7
      %v597 = vlaneseq
      %v598 = vand.u32 %v597, 127
      %vm599 = vcmp.eq.s32.totalorder %v596, %v598
      %v600 = vsel %vm599, 1, 0
      %v601 = vcvt.s32.f32 %v600
      %603 = vst [vmem:[#allocation1] ss:$2 sm:$0xff] %v594
      %v604 = vld.sshfl [vmem:[#allocation1] sm:$0xff pattern:$0x75316420]
      %v605 = vld.sshfl [vmem:[#allocation1 + $0x8] sm:$0xff pattern:$0x75316420]
      %vm606 = vcmask 31744
      %v608 = vsel %vm606, %v601, 0
      %vm610 = vcmask 1043456
      %v611 = vsel %vm610, %v604, 0
      %v613 = vsel %vm610, %v605, 0
      %615 = vmatpush.msra.mxu0 0.0
      %616 = vmatpush.msra.mxu0 0.0
      %617 = vmatpush.msra.mxu0 0.0
      %618 = vmatpush.msra.mxu0 0.0
      %619 = vmatpush.msra.mxu0 0.0
      %620 = vmatpush.msra.mxu0 0.0
      %621 = vmatpush.msra.mxu0 0.0
      %622 = vmatpush.msra.mxu0 0.0
      %623 = vmatpush.msra.mxu0 0.0
      %624 = vmatpush.msra.mxu0 0.0
      %625 = vmatpush.msra.mxu0 0.0
      %626 = vmatpush.msra.mxu0 0.0
      %627 = vmatpush.msra.mxu0 0.0
      %628 = vmatpush.msra.mxu0 0.0
      %629 = vmatpush.msra.mxu0 0.0
      %630 = vmatpush.msra.mxu0 %v611
      %631 = vmatmul.f32.gmra.mxu0 %v608
      %v632 = vpop.f32.mrf.mxu0
      %v633 = vadd.f32 0.0, %v632
      %634 = vdwg.mxu0
      %635 = vmatpush.msra.mxu0 0.0
      %636 = vmatpush.msra.mxu0 0.0
      %637 = vmatpush.msra.mxu0 0.0
      %638 = vmatpush.msra.mxu0 0.0
      %639 = vmatpush.msra.mxu0 0.0
      %640 = vmatpush.msra.mxu0 0.0
      %641 = vmatpush.msra.mxu0 0.0
      %642 = vmatpush.msra.mxu0 0.0
      %643 = vmatpush.msra.mxu0 0.0
      %644 = vmatpush.msra.mxu0 0.0
      %645 = vmatpush.msra.mxu0 0.0
      %646 = vmatpush.msra.mxu0 0.0
      %647 = vmatpush.msra.mxu0 0.0
      %648 = vmatpush.msra.mxu0 0.0
      %649 = vmatpush.msra.mxu0 0.0
      %650 = vmatpush.msra.mxu0 %v613
      %651 = vmatmul.f32.gmra.mxu0 %v608
      %v652 = vpop.f32.mrf.mxu0
      %v653 = vadd.f32 0.0, %v652
      %654 = vdwg.mxu0
      %655 = vrot.lane.b32.xlu0 %v633, 112
      %v656 = vpop.permute.xlu0 %655
      %657 = vrot.lane.b32.xlu0 %v653, 112
      %v658 = vpop.permute.xlu0 %657
      %vm659 = vcmp.lt.s32.totalorder %v598, 112
      %v660 = vsel %vm659, %v656, %v658
      %v661 = vsel %vm659, %v658, %v656
      %v662 = vmax.f32 %v633, %v660
      %v663 = vmax.f32 %v653, %v661
      %664 = vrot.lane.b32.xlu0 %v662, 127
      %v665 = vpop.permute.xlu0 %664
      %666 = vrot.lane.b32.xlu0 %v663, 127
      %v667 = vpop.permute.xlu0 %666
      %vm668 = vcmp.lt.s32.totalorder %v598, 127
      %v669 = vsel %vm668, %v665, %v667
      %v670 = vsel %vm668, %v667, %v665
      %v671 = vmax.f32 %v662, %v669
      %v672 = vmax.f32 %v663, %v670
      %v673 = vld [vmem:[%s2] sm:$0xff]
      %v674 = vld [vmem:[%s2 + $0x8] sm:$0xff]
      %v675 = vld [vmem:[%s2 + $0x10] sm:$0xff]
      %v676 = vld [vmem:[%s2 + $0x18] sm:$0xff]
      %v677 = vld [vmem:[%s2 + $0x20] sm:$0xff]
      %v678 = vld [vmem:[%s2 + $0x28] sm:$0xff]
      %v679 = vld [vmem:[%s2 + $0x30] sm:$0xff]
      %v680 = vld [vmem:[%s2 + $0x38] sm:$0xff]
      %v681 = vld [vmem:[%s2 + $0x40] sm:$0xff]
      %v682 = vld [vmem:[%s2 + $0x48] sm:$0xff]
      %v683 = vld [vmem:[%s2 + $0x50] sm:$0xff]
      %v684 = vld [vmem:[%s2 + $0x58] sm:$0xff]
      %v685 = vld [vmem:[%s2 + $0x60] sm:$0xff]
      %v686 = vld [vmem:[%s2 + $0x68] sm:$0xff]
      %v687 = vld [vmem:[%s2 + $0x70] sm:$0xff]
      %v688 = vld [vmem:[%s2 + $0x78] sm:$0xff]
      %v689 = vld [vmem:[%s2 + $0x80] sm:$0xff]
      %v690 = vld [vmem:[%s2 + $0x88] sm:$0xff]
      %v691 = vld [vmem:[%s2 + $0x90] sm:$0xff]
      %v692 = vld [vmem:[%s2 + $0x98] sm:$0xff]
      %v693 = vld [vmem:[%s2 + $0xa0] sm:$0xff]
      %v694 = vld [vmem:[%s2 + $0xa8] sm:$0xff]
      %v695 = vld [vmem:[%s2 + $0xb0] sm:$0xff]
      %v696 = vld [vmem:[%s2 + $0xb8] sm:$0xff]
      %v697 = vld [vmem:[%s2 + $0xc0] sm:$0xff]
      %v698 = vld [vmem:[%s2 + $0xc8] sm:$0xff]
      %v699 = vld [vmem:[%s2 + $0xd0] sm:$0xff]
      %v700 = vld [vmem:[%s2 + $0xd8] sm:$0xff]
      %v701 = vld [vmem:[%s2 + $0xe0] sm:$0xff]
      %v702 = vld [vmem:[%s2 + $0xe8] sm:$0xff]
      %v703 = vld [vmem:[%s2 + $0xf0] sm:$0xff]
      %v704 = vld [vmem:[%s2 + $0xf8] sm:$0xff]
      %705 = vmatpush.msra.mxu0 %v688
      %706 = vmatpush.msra.mxu0 %v687
      %707 = vmatpush.msra.mxu0 %v686
      %708 = vmatpush.msra.mxu0 %v685
      %709 = vmatpush.msra.mxu0 %v684
      %710 = vmatpush.msra.mxu0 %v683
      %711 = vmatpush.msra.mxu0 %v682
      %712 = vmatpush.msra.mxu0 %v681
      %713 = vmatpush.msra.mxu0 %v680
      %714 = vmatpush.msra.mxu0 %v679
      %715 = vmatpush.msra.mxu0 %v678
      %716 = vmatpush.msra.mxu0 %v677
      %717 = vmatpush.msra.mxu0 %v676
      %718 = vmatpush.msra.mxu0 %v675
      %719 = vmatpush.msra.mxu0 %v674
      %720 = vmatpush.msra.mxu0 %v673
      %721 = vmatmul.f32.gmra.mxu0 %v671
      %v722 = vpop.f32.mrf.mxu0
      %v723 = vadd.f32 0.0, %v722
      %724 = vdwg.mxu0
      %725 = vmatpush.msra.mxu0 %v704
      %726 = vmatpush.msra.mxu0 %v703
      %727 = vmatpush.msra.mxu0 %v702
      %728 = vmatpush.msra.mxu0 %v701
      %729 = vmatpush.msra.mxu0 %v700
      %730 = vmatpush.msra.mxu0 %v699
      %731 = vmatpush.msra.mxu0 %v698
      %732 = vmatpush.msra.mxu0 %v697
      %733 = vmatpush.msra.mxu0 %v696
      %734 = vmatpush.msra.mxu0 %v695
      %735 = vmatpush.msra.mxu0 %v694
      %736 = vmatpush.msra.mxu0 %v693
      %737 = vmatpush.msra.mxu0 %v692
      %738 = vmatpush.msra.mxu0 %v691
      %739 = vmatpush.msra.mxu0 %v690
      %740 = vmatpush.msra.mxu0 %v689
      %741 = vmatmul.f32.gmra.mxu0 %v672
      %v742 = vpop.f32.mrf.mxu0
      %v743 = vadd.f32 %v723, %v742
      %744 = vdwg.mxu0
      %v745 = vld [vmem:[%s3] sm:$0xff]
      %v746 = vld [vmem:[%s3 + $0x8] sm:$0x1]
      %vm747 = vcmask 1048064
      %748 = vrot.lane.b32.xlu0 %v743, 64
      %v749 = vpop.permute.xlu0 %748
      %v750 = vsel %vm747, %v749, %v743
      %751 = vrot.lane.b32.xlu0 %v750, 64
      %v752 = vpop.permute.xlu0 %751
      %v753 = vsel %vm747, %v752, %v743
      %v754 = vperm.slane %v745, 0
      %756 = vrot.lane.b32.xlu0 %v754, 55
      %v757 = vpop.permute.xlu0 %756
      %v759 = vmul.f32 %v753, %v757
      %v760 = vperm.slane %v745, 1
      %762 = vrot.lane.b32.xlu0 %v760, 56
      %v763 = vpop.permute.xlu0 %762
      %v765 = vmul.f32 %v753, %v763
      %v766 = vperm.slane %v745, 2
      %768 = vrot.lane.b32.xlu0 %v766, 57
      %v769 = vpop.permute.xlu0 %768
      %v771 = vmul.f32 %v753, %v769
      %v772 = vperm.slane %v745, 3
      %774 = vrot.lane.b32.xlu0 %v772, 63
      %v775 = vpop.permute.xlu0 %774
      %v777 = vmul.f32 %v753, %v775
      %v778 = vperm.slane %v745, 5
      %780 = vrot.lane.b32.xlu0 %v778, 1
      %v781 = vpop.permute.xlu0 %780
      %v783 = vmul.f32 %v753, %v781
      %v784 = vperm.slane %v745, 6
      %786 = vrot.lane.b32.xlu0 %v784, 7
      %v787 = vpop.permute.xlu0 %786
      %v789 = vmul.f32 %v753, %v787
      %v790 = vperm.slane %v745, 7
      %792 = vrot.lane.b32.xlu0 %v790, 8
      %v793 = vpop.permute.xlu0 %792
      %v795 = vmul.f32 %v753, %v793
      %v796 = vperm.slane %v746, 0
      %798 = vrot.lane.b32.xlu0 %v796, 9
      %v799 = vpop.permute.xlu0 %798
      %v801 = vmul.f32 %v753, %v799
      %803 = vrot.lane.b32.xlu0 %v765, 127
      %v804 = vpop.permute.xlu0 %803
      %806 = vrot.lane.b32.xlu0 %v771, 126
      %v807 = vpop.permute.xlu0 %806
      %809 = vrot.lane.b32.xlu0 %v777, 120
      %v810 = vpop.permute.xlu0 %809
      %812 = vrot.lane.b32.xlu0 %v743, 55
      %v813 = vpop.permute.xlu0 %812
      %815 = vrot.lane.b32.xlu0 %v783, 54
      %v816 = vpop.permute.xlu0 %815
      %818 = vrot.lane.b32.xlu0 %v789, 48
      %v819 = vpop.permute.xlu0 %818
      %821 = vrot.lane.b32.xlu0 %v795, 47
      %v822 = vpop.permute.xlu0 %821
      %824 = vrot.lane.b32.xlu0 %v801, 46
      %v825 = vpop.permute.xlu0 %824
      %v826 = vld [vmem:[%s4] sm:$0xff]
      %828 = vrot.lane.b32.xlu0 %v759, 73
      %v829 = vpop.permute.xlu0 %828
      %830 = vrot.lane.b32.xlu0 %v804, 73
      %v831 = vpop.permute.xlu0 %830
      %832 = vrot.lane.b32.xlu0 %v807, 73
      %v833 = vpop.permute.xlu0 %832
      %834 = vrot.lane.b32.xlu0 %v810, 73
      %v835 = vpop.permute.xlu0 %834
      %836 = vrot.lane.b32.xlu0 %v813, 73
      %v837 = vpop.permute.xlu0 %836
      %838 = vrot.lane.b32.xlu0 %v816, 73
      %v839 = vpop.permute.xlu0 %838
      %840 = vrot.lane.b32.xlu0 %v819, 73
      %v841 = vpop.permute.xlu0 %840
      %842 = vrot.lane.b32.xlu0 %v822, 73
      %v843 = vpop.permute.xlu0 %842
      %844 = vrot.lane.b32.xlu0 %v825, 73
      %v845 = vpop.permute.xlu0 %844
      %vm855 = vcmask 588800
      %v857 = vsel %vm855, %v826, 0
      %859 = vmatpush.msra.mxu0 0.0
      %860 = vmatpush.msra.mxu0 0.0
      %861 = vmatpush.msra.mxu0 0.0
      %862 = vmatpush.msra.mxu0 0.0
      %863 = vmatpush.msra.mxu0 0.0
      %864 = vmatpush.msra.mxu0 0.0
      %865 = vmatpush.msra.mxu0 0.0
      %866 = vmatpush.msra.mxu0 %v845
      %867 = vmatpush.msra.mxu0 %v843
      %868 = vmatpush.msra.mxu0 %v841
      %869 = vmatpush.msra.mxu0 %v839
      %870 = vmatpush.msra.mxu0 %v837
      %871 = vmatpush.msra.mxu0 %v835
      %872 = vmatpush.msra.mxu0 %v833
      %873 = vmatpush.msra.mxu0 %v831
      %874 = vmatpush.msra.mxu0 %v829
      %875 = vmatmul.f32.gmra.mxu0 %v857
      %v876 = vpop.f32.mrf.mxu0
      %v877 = vadd.f32 0.0, %v876
      %878 = vdwg.mxu0
      %vm879 = vcmask 523264
      %v880 = vsel %vm879, %v877, 0.0
      %881 = vadd.xlane.f32.xlu0 %v880
      %v882 = vpop.xlane.xlu0 %881
      %v883 = vrot.slane %v882, 4
      %v884 = vadd.f32 %v882, %v883
      %v885 = vrot.slane %v884, 2
      %v886 = vadd.f32 %v884, %v885
      %v887 = vrot.slane %v886, 1
      %v888 = vadd.f32 %v886, %v887
      %s889 = vtos %v888
      %v890 = vrcp.pop 256.0
      %v891 = vmul.f32 256.0, %v890
      %v892 = vsub.f32 1.0, %v891
      %v893 = vmul.f32 %v890, %v892
      %v894 = vadd.f32 %v890, %v893
      %vm895 = vweird.f32 %v890
      %v896 = vsel %vm895, %v890, %v894
      %s897 = vtos %v896
      %s898 = smul.f32 %s889, %s897
      %v899 = vstv %s898
      %v900 = vsub.f32 %v877, %v899
      %v901 = vmul.f32 %v900, %v900
      %v902 = vsel %vm879, %v901, 0.0
      %903 = vadd.xlane.f32.xlu0 %v902
      %v904 = vpop.xlane.xlu0 %903
      %v905 = vrot.slane %v904, 4
      %v906 = vadd.f32 %v904, %v905
      %v907 = vrot.slane %v906, 2
      %v908 = vadd.f32 %v906, %v907
      %v909 = vrot.slane %v908, 1
      %v910 = vadd.f32 %v908, %v909
      %s911 = vtos %v910
      %s912 = smul.f32 %s898, 256.0
      %s913 = smul.f32 %s912, %s898
      %s914 = ssub.f32 %s911, %s913
      %v915 = vrcp.pop 256.0
      %v916 = vmul.f32 256.0, %v915
      %v917 = vsub.f32 1.0, %v916
      %v918 = vmul.f32 %v915, %v917
      %v919 = vadd.f32 %v915, %v918
      %vm920 = vweird.f32 %v915
      %v921 = vsel %vm920, %v915, %v919
      %s922 = vtos %v921
      %s923 = smul.f32 %s914, %s922
      %s924 = smax.f32 %s923, 0.0
      %s925 = sadd.f32 %s924, 1e-05
      %v926 = vstv %s925
      %v927 = vrsqrt.pop %v926
      %v928 = vmul.f32 %v927, %v926
      %v929 = vmul.f32 %v928, %v927
      %v930 = vmul.f32 0.5, %v929
      %v931 = vsub.f32 1.5, %v930
      %v932 = vmul.f32 %v927, %v931
      %vm933 = vweird.f32 %v926
      %vm934 = vweird.f32 %v927
      %vm935 = vmor %vm933, %vm934
      %v936 = vsel %vm935, %v927, %v932
      %s937 = vtos %v936
      %v938 = vstv %s937
      %v939 = vmul.f32 %v900, %v938
      %v940 = vld [vmem:[%s5] sm:$0xff]
      %942 = vset.pattern.permute.xlu0 0
      %943 = vperm.xlu0 %942, %v940
      %v944 = vpop.permute.xlu0 %943
      %v946 = vmul.f32 %v939, %v944
      %v947 = vld [vmem:[%s6] sm:$0xff]
      %949 = vset.pattern.permute.xlu0 0
      %950 = vperm.xlu0 %949, %v947
      %v951 = vpop.permute.xlu0 %950
      %v953 = vadd.f32 %v946, %v951
      %v954 = vand.u32 2147483647, %v953
      %v955 = vmul.f32 %v954, 0.70710677
      %v956 = vmul.f32 %v955, 0.3275911
      %v957 = vadd.f32 %v956, 1.0
      %v958 = vrcp.pop %v957
      %v959 = vmul.f32 %v958, 1.0614054
      %v960 = vadd.f32 %v959, -1.4531521
      %v961 = vmul.f32 %v958, %v960
      %v962 = vadd.f32 %v961, 1.4214138
      %v963 = vmul.f32 %v958, %v962
      %v964 = vadd.f32 %v963, -0.28449672
      %v965 = vmul.f32 %v958, %v964
      %v966 = vadd.f32 %v965, 0.2548296
      %v967 = vmul.f32 %v958, %v966
      %v968 = vsub.f32 0.0, %v955
      %v969 = vmul.f32 %v968, %v955
      %v970 = vmul.f32 %v969, 1.442695
      %v971 = vpow.pop %v970
      %v972 = vmul.f32 %v967, %v971
      %v973 = vsub.f32 1.0, %v972
      %vm974 = vcmp.ge.f32.partialorder %v953, 0.0
      %v975 = vsub.f32 0.0, %v973
      %v976 = vsel %vm974, %v973, %v975
      %v977 = vmul.f32 %v953, 0.5
      %v978 = vadd.f32 %v976, 1.0
      %v979 = vmul.f32 %v977, %v978
      %980 = vrot.lane.b32.xlu0 %v979, 64
      %v981 = vpop.permute.xlu0 %980
      %v982 = vsel %vm747, %v981, %v979
      %983 = vrot.lane.b32.xlu0 %v982, 64
      %v984 = vpop.permute.xlu0 %983
      %v985 = vsel %vm747, %v984, %v979
      %v986 = vmul.f32 %v985, %v757
      %v987 = vmul.f32 %v985, %v763
      %v988 = vmul.f32 %v985, %v769
      %v989 = vmul.f32 %v985, %v775
      %v990 = vmul.f32 %v985, %v781
      %v991 = vmul.f32 %v985, %v787
      %v992 = vmul.f32 %v985, %v793
      %v993 = vmul.f32 %v985, %v799
      %995 = vrot.lane.b32.xlu0 %v987, 127
      %v996 = vpop.permute.xlu0 %995
      %998 = vrot.lane.b32.xlu0 %v988, 126
      %v999 = vpop.permute.xlu0 %998
      %1001 = vrot.lane.b32.xlu0 %v989, 120
      %v1002 = vpop.permute.xlu0 %1001
      %1004 = vrot.lane.b32.xlu0 %v979, 55
      %v1005 = vpop.permute.xlu0 %1004
      %1007 = vrot.lane.b32.xlu0 %v990, 54
      %v1008 = vpop.permute.xlu0 %1007
      %1010 = vrot.lane.b32.xlu0 %v991, 48
      %v1011 = vpop.permute.xlu0 %1010
      %1013 = vrot.lane.b32.xlu0 %v992, 47
      %v1014 = vpop.permute.xlu0 %1013
      %1016 = vrot.lane.b32.xlu0 %v993, 46
      %v1017 = vpop.permute.xlu0 %1016
      %v1018 = vld [vmem:[%s7] sm:$0xff]
      %1020 = vrot.lane.b32.xlu0 %v986, 73
      %v1021 = vpop.permute.xlu0 %1020
      %1022 = vrot.lane.b32.xlu0 %v996, 73
      %v1023 = vpop.permute.xlu0 %1022
      %1024 = vrot.lane.b32.xlu0 %v999, 73
      %v1025 = vpop.permute.xlu0 %1024
      %1026 = vrot.lane.b32.xlu0 %v1002, 73
      %v1027 = vpop.permute.xlu0 %1026
      %1028 = vrot.lane.b32.xlu0 %v1005, 73
      %v1029 = vpop.permute.xlu0 %1028
      %1030 = vrot.lane.b32.xlu0 %v1008, 73
      %v1031 = vpop.permute.xlu0 %1030
      %1032 = vrot.lane.b32.xlu0 %v1011, 73
      %v1033 = vpop.permute.xlu0 %1032
      %1034 = vrot.lane.b32.xlu0 %v1014, 73
      %v1035 = vpop.permute.xlu0 %1034
      %1036 = vrot.lane.b32.xlu0 %v1017, 73
      %v1037 = vpop.permute.xlu0 %1036
      %v1048 = vsel %vm855, %v1018, 0
      %1050 = vmatpush.msra.mxu0 0.0
      %1051 = vmatpush.msra.mxu0 0.0
      %1052 = vmatpush.msra.mxu0 0.0
      %1053 = vmatpush.msra.mxu0 0.0
      %1054 = vmatpush.msra.mxu0 0.0
      %1055 = vmatpush.msra.mxu0 0.0
      %1056 = vmatpush.msra.mxu0 0.0
      %1057 = vmatpush.msra.mxu0 %v1037
      %1058 = vmatpush.msra.mxu0 %v1035
      %1059 = vmatpush.msra.mxu0 %v1033
      %1060 = vmatpush.msra.mxu0 %v1031
      %1061 = vmatpush.msra.mxu0 %v1029
      %1062 = vmatpush.msra.mxu0 %v1027
      %1063 = vmatpush.msra.mxu0 %v1025
      %1064 = vmatpush.msra.mxu0 %v1023
      %1065 = vmatpush.msra.mxu0 %v1021
      %1066 = vmatmul.f32.gmra.mxu0 %v1048
      %v1067 = vpop.f32.mrf.mxu0
      %v1068 = vadd.f32 0.0, %v1067
      %1069 = vdwg.mxu0
      %v1070 = vsel %vm879, %v1068, 0.0
      %1071 = vadd.xlane.f32.xlu0 %v1070
      %v1072 = vpop.xlane.xlu0 %1071
      %v1073 = vrot.slane %v1072, 4
      %v1074 = vadd.f32 %v1072, %v1073
      %v1075 = vrot.slane %v1074, 2
      %v1076 = vadd.f32 %v1074, %v1075
      %v1077 = vrot.slane %v1076, 1
      %v1078 = vadd.f32 %v1076, %v1077
      %s1079 = vtos %v1078
      %v1080 = vrcp.pop 256.0
      %v1081 = vmul.f32 256.0, %v1080
      %v1082 = vsub.f32 1.0, %v1081
      %v1083 = vmul.f32 %v1080, %v1082
      %v1084 = vadd.f32 %v1080, %v1083
      %vm1085 = vweird.f32 %v1080
      %v1086 = vsel %vm1085, %v1080, %v1084
      %s1087 = vtos %v1086
      %s1088 = smul.f32 %s1079, %s1087
      %v1089 = vstv %s1088
      %v1090 = vsub.f32 %v1068, %v1089
      %v1091 = vmul.f32 %v1090, %v1090
      %v1092 = vsel %vm879, %v1091, 0.0
      %1093 = vadd.xlane.f32.xlu0 %v1092
      %v1094 = vpop.xlane.xlu0 %1093
      %v1095 = vrot.slane %v1094, 4
      %v1096 = vadd.f32 %v1094, %v1095
      %v1097 = vrot.slane %v1096, 2
      %v1098 = vadd.f32 %v1096, %v1097
      %v1099 = vrot.slane %v1098, 1
      %v1100 = vadd.f32 %v1098, %v1099
      %s1101 = vtos %v1100
      %s1102 = smul.f32 %s1088, 256.0
      %s1103 = smul.f32 %s1102, %s1088
      %s1104 = ssub.f32 %s1101, %s1103
      %v1105 = vrcp.pop 256.0
      %v1106 = vmul.f32 256.0, %v1105
      %v1107 = vsub.f32 1.0, %v1106
      %v1108 = vmul.f32 %v1105, %v1107
      %v1109 = vadd.f32 %v1105, %v1108
      %vm1110 = vweird.f32 %v1105
      %v1111 = vsel %vm1110, %v1105, %v1109
      %s1112 = vtos %v1111
      %s1113 = smul.f32 %s1104, %s1112
      %s1114 = smax.f32 %s1113, 0.0
      %s1115 = sadd.f32 %s1114, 1e-05
      %v1116 = vstv %s1115
      %v1117 = vrsqrt.pop %v1116
      %v1118 = vmul.f32 %v1117, %v1116
      %v1119 = vmul.f32 %v1118, %v1117
      %v1120 = vmul.f32 0.5, %v1119
      %v1121 = vsub.f32 1.5, %v1120
      %v1122 = vmul.f32 %v1117, %v1121
      %vm1123 = vweird.f32 %v1116
      %vm1124 = vweird.f32 %v1117
      %vm1125 = vmor %vm1123, %vm1124
      %v1126 = vsel %vm1125, %v1117, %v1122
      %s1127 = vtos %v1126
      %v1128 = vstv %s1127
      %v1129 = vmul.f32 %v1090, %v1128
      %v1130 = vld [vmem:[%s8] sm:$0xff]
      %1132 = vset.pattern.permute.xlu0 0
      %1133 = vperm.xlu0 %1132, %v1130
      %v1134 = vpop.permute.xlu0 %1133
      %v1136 = vmul.f32 %v1129, %v1134
      %v1137 = vld [vmem:[%s9] sm:$0xff]
      %1139 = vset.pattern.permute.xlu0 0
      %1140 = vperm.xlu0 %1139, %v1137
      %v1141 = vpop.permute.xlu0 %1140
      %v1143 = vadd.f32 %v1136, %v1141
      %v1144 = vadd.f32 %v1143, %v743
      %v1145 = vand.u32 2147483647, %v1144
      %v1146 = vmul.f32 %v1145, 0.70710677
      %v1147 = vmul.f32 %v1146, 0.3275911
      %v1148 = vadd.f32 %v1147, 1.0
      %v1149 = vrcp.pop %v1148
      %v1150 = vmul.f32 %v1149, 1.0614054
      %v1151 = vadd.f32 %v1150, -1.4531521
      %v1152 = vmul.f32 %v1149, %v1151
      %v1153 = vadd.f32 %v1152, 1.4214138
      %v1154 = vmul.f32 %v1149, %v1153
      %v1155 = vadd.f32 %v1154, -0.28449672
      %v1156 = vmul.f32 %v1149, %v1155
      %v1157 = vadd.f32 %v1156, 0.2548296
      %v1158 = vmul.f32 %v1149, %v1157
      %v1159 = vsub.f32 0.0, %v1146
      %v1160 = vmul.f32 %v1159, %v1146
      %v1161 = vmul.f32 %v1160, 1.442695
      %v1162 = vpow.pop %v1161
      %v1163 = vmul.f32 %v1158, %v1162
      %v1164 = vsub.f32 1.0, %v1163
      %vm1165 = vcmp.ge.f32.partialorder %v1144, 0.0
      %v1166 = vsub.f32 0.0, %v1164
      %v1167 = vsel %vm1165, %v1164, %v1166
      %v1168 = vmul.f32 %v1144, 0.5
      %v1169 = vadd.f32 %v1167, 1.0
      %v1170 = vmul.f32 %v1168, %v1169
      %1171 = vrot.lane.b32.xlu0 %v1170, 64
      %v1172 = vpop.permute.xlu0 %1171
      %v1173 = vsel %vm747, %v1172, %v1170
      %1174 = vrot.lane.b32.xlu0 %v1173, 64
      %v1175 = vpop.permute.xlu0 %1174
      %v1176 = vsel %vm747, %v1175, %v1170
      %v1177 = vmul.f32 %v1176, %v757
      %v1178 = vmul.f32 %v1176, %v763
      %v1179 = vmul.f32 %v1176, %v769
      %v1180 = vmul.f32 %v1176, %v775
      %v1181 = vmul.f32 %v1176, %v781
      %v1182 = vmul.f32 %v1176, %v787
      %v1183 = vmul.f32 %v1176, %v793
      %v1184 = vmul.f32 %v1176, %v799
      %1186 = vrot.lane.b32.xlu0 %v1178, 127
      %v1187 = vpop.permute.xlu0 %1186
      %1189 = vrot.lane.b32.xlu0 %v1179, 126
      %v1190 = vpop.permute.xlu0 %1189
      %1192 = vrot.lane.b32.xlu0 %v1180, 120
      %v1193 = vpop.permute.xlu0 %1192
      %1195 = vrot.lane.b32.xlu0 %v1170, 55
      %v1196 = vpop.permute.xlu0 %1195
      %1198 = vrot.lane.b32.xlu0 %v1181, 54
      %v1199 = vpop.permute.xlu0 %1198
      %1201 = vrot.lane.b32.xlu0 %v1182, 48
      %v1202 = vpop.permute.xlu0 %1201
      %1204 = vrot.lane.b32.xlu0 %v1183, 47
      %v1205 = vpop.permute.xlu0 %1204
      %1207 = vrot.lane.b32.xlu0 %v1184, 46
      %v1208 = vpop.permute.xlu0 %1207
      %v1209 = vld [vmem:[%s10] sm:$0xff]
      %1211 = vrot.lane.b32.xlu0 %v1177, 73
      %v1212 = vpop.permute.xlu0 %1211
      %1213 = vrot.lane.b32.xlu0 %v1187, 73
      %v1214 = vpop.permute.xlu0 %1213
      %1215 = vrot.lane.b32.xlu0 %v1190, 73
      %v1216 = vpop.permute.xlu0 %1215
      %1217 = vrot.lane.b32.xlu0 %v1193, 73
      %v1218 = vpop.permute.xlu0 %1217
      %1219 = vrot.lane.b32.xlu0 %v1196, 73
      %v1220 = vpop.permute.xlu0 %1219
      %1221 = vrot.lane.b32.xlu0 %v1199, 73
      %v1222 = vpop.permute.xlu0 %1221
      %1223 = vrot.lane.b32.xlu0 %v1202, 73
      %v1224 = vpop.permute.xlu0 %1223
      %1225 = vrot.lane.b32.xlu0 %v1205, 73
      %v1226 = vpop.permute.xlu0 %1225
      %1227 = vrot.lane.b32.xlu0 %v1208, 73
      %v1228 = vpop.permute.xlu0 %1227
      %v1239 = vsel %vm855, %v1209, 0
      %1241 = vmatpush.msra.mxu0 0.0
      %1242 = vmatpush.msra.mxu0 0.0
      %1243 = vmatpush.msra.mxu0 0.0
      %1244 = vmatpush.msra.mxu0 0.0
      %1245 = vmatpush.msra.mxu0 0.0
      %1246 = vmatpush.msra.mxu0 0.0
      %1247 = vmatpush.msra.mxu0 0.0
      %1248 = vmatpush.msra.mxu0 %v1228
      %1249 = vmatpush.msra.mxu0 %v1226
      %1250 = vmatpush.msra.mxu0 %v1224
      %1251 = vmatpush.msra.mxu0 %v1222
      %1252 = vmatpush.msra.mxu0 %v1220
      %1253 = vmatpush.msra.mxu0 %v1218
      %1254 = vmatpush.msra.mxu0 %v1216
      %1255 = vmatpush.msra.mxu0 %v1214
      %1256 = vmatpush.msra.mxu0 %v1212
      %1257 = vmatmul.f32.gmra.mxu0 %v1239
      %v1258 = vpop.f32.mrf.mxu0
      %v1259 = vadd.f32 0.0, %v1258
      %1260 = vdwg.mxu0
      %v1261 = vsel %vm879, %v1259, 0.0
      %1262 = vadd.xlane.f32.xlu0 %v1261
      %v1263 = vpop.xlane.xlu0 %1262
      %v1264 = vrot.slane %v1263, 4
      %v1265 = vadd.f32 %v1263, %v1264
      %v1266 = vrot.slane %v1265, 2
      %v1267 = vadd.f32 %v1265, %v1266
      %v1268 = vrot.slane %v1267, 1
      %v1269 = vadd.f32 %v1267, %v1268
      %s1270 = vtos %v1269
      %v1271 = vrcp.pop 512.0
      %v1272 = vmul.f32 512.0, %v1271
      %v1273 = vsub.f32 1.0, %v1272
      %v1274 = vmul.f32 %v1271, %v1273
      %v1275 = vadd.f32 %v1271, %v1274
      %vm1276 = vweird.f32 %v1271
      %v1277 = vsel %vm1276, %v1271, %v1275
      %s1278 = vtos %v1277
      %s1279 = smul.f32 %s1270, %s1278
      %v1280 = vstv %s1279
      %v1281 = vsub.f32 %v1259, %v1280
      %v1282 = vmul.f32 %v1281, %v1281
      %v1283 = vsel %vm879, %v1282, 0.0
      %1284 = vadd.xlane.f32.xlu0 %v1283
      %v1285 = vpop.xlane.xlu0 %1284
      %v1286 = vrot.slane %v1285, 4
      %v1287 = vadd.f32 %v1285, %v1286
      %v1288 = vrot.slane %v1287, 2
      %v1289 = vadd.f32 %v1287, %v1288
      %v1290 = vrot.slane %v1289, 1
      %v1291 = vadd.f32 %v1289, %v1290
      %s1292 = vtos %v1291
      %s1293 = smul.f32 %s1279, 0.0
      %s1294 = smul.f32 %s1293, %s1279
      %s1295 = ssub.f32 %s1292, %s1294
      %v1296 = vrcp.pop 512.0
      %v1297 = vmul.f32 512.0, %v1296
      %v1298 = vsub.f32 1.0, %v1297
      %v1299 = vmul.f32 %v1296, %v1298
      %v1300 = vadd.f32 %v1296, %v1299
      %vm1301 = vweird.f32 %v1296
      %v1302 = vsel %vm1301, %v1296, %v1300
      %s1303 = vtos %v1302
      %s1304 = smul.f32 %s1295, %s1303
      %s1305 = smax.f32 %s1304, 0.0
      %s1306 = sadd.f32 %s1305, 1e-05
      %v1307 = vstv %s1306
      %v1308 = vrsqrt.pop %v1307
      %v1309 = vmul.f32 %v1308, %v1307
      %v1310 = vmul.f32 %v1309, %v1308
      %v1311 = vmul.f32 0.5, %v1310
      %v1312 = vsub.f32 1.5, %v1311
      %v1313 = vmul.f32 %v1308, %v1312
      %vm1314 = vweird.f32 %v1307
      %vm1315 = vweird.f32 %v1308
      %vm1316 = vmor %vm1314, %vm1315
      %v1317 = vsel %vm1316, %v1308, %v1313
      %s1318 = vtos %v1317
      %v1319 = vstv %s1318
      %v1320 = vmul.f32 %v1281, %v1319
      %v1321 = vld [vmem:[%s11] sm:$0xff]
      %1323 = vset.pattern.permute.xlu0 0
      %1324 = vperm.xlu0 %1323, %v1321
      %v1325 = vpop.permute.xlu0 %1324
      %v1327 = vmul.f32 %v1320, %v1325
      %v1328 = vld [vmem:[%s12] sm:$0xff]
      %1330 = vset.pattern.permute.xlu0 0
      %1331 = vperm.xlu0 %1330, %v1328
      %v1332 = vpop.permute.xlu0 %1331
      %v1334 = vadd.f32 %v1327, %v1332
      %v1335 = vand.u32 2147483647, %v1334
      %v1336 = vmul.f32 %v1335, 0.70710677
      %v1337 = vmul.f32 %v1336, 0.3275911
      %v1338 = vadd.f32 %v1337, 1.0
      %v1339 = vrcp.pop %v1338
      %v1340 = vmul.f32 %v1339, 1.0614054
      %v1341 = vadd.f32 %v1340, -1.4531521
      %v1342 = vmul.f32 %v1339, %v1341
      %v1343 = vadd.f32 %v1342, 1.4214138
      %v1344 = vmul.f32 %v1339, %v1343
      %v1345 = vadd.f32 %v1344, -0.28449672
      %v1346 = vmul.f32 %v1339, %v1345
      %v1347 = vadd.f32 %v1346, 0.2548296
      %v1348 = vmul.f32 %v1339, %v1347
      %v1349 = vsub.f32 0.0, %v1336
      %v1350 = vmul.f32 %v1349, %v1336
      %v1351 = vmul.f32 %v1350, 1.442695
      %v1352 = vpow.pop %v1351
      %v1353 = vmul.f32 %v1348, %v1352
      %v1354 = vsub.f32 1.0, %v1353
      %vm1355 = vcmp.ge.f32.partialorder %v1334, 0.0
      %v1356 = vsub.f32 0.0, %v1354
      %v1357 = vsel %vm1355, %v1354, %v1356
      %v1358 = vmul.f32 %v1334, 0.5
      %v1359 = vadd.f32 %v1357, 1.0
      %v1360 = vmul.f32 %v1358, %v1359
      %1361 = vrot.lane.b32.xlu0 %v1360, 64
      %v1362 = vpop.permute.xlu0 %1361
      %v1363 = vsel %vm747, %v1362, %v1360
      %1364 = vrot.lane.b32.xlu0 %v1363, 64
      %v1365 = vpop.permute.xlu0 %1364
      %v1366 = vsel %vm747, %v1365, %v1360
      %v1367 = vmul.f32 %v1366, %v757
      %v1368 = vmul.f32 %v1366, %v763
      %v1369 = vmul.f32 %v1366, %v769
      %v1370 = vmul.f32 %v1366, %v775
      %v1371 = vmul.f32 %v1366, %v781
      %v1372 = vmul.f32 %v1366, %v787
      %v1373 = vmul.f32 %v1366, %v793
      %v1374 = vmul.f32 %v1366, %v799
      %1376 = vrot.lane.b32.xlu0 %v1368, 127
      %v1377 = vpop.permute.xlu0 %1376
      %1379 = vrot.lane.b32.xlu0 %v1369, 126
      %v1380 = vpop.permute.xlu0 %1379
      %1382 = vrot.lane.b32.xlu0 %v1370, 120
      %v1383 = vpop.permute.xlu0 %1382
      %1385 = vrot.lane.b32.xlu0 %v1360, 55
      %v1386 = vpop.permute.xlu0 %1385
      %1388 = vrot.lane.b32.xlu0 %v1371, 54
      %v1389 = vpop.permute.xlu0 %1388
      %1391 = vrot.lane.b32.xlu0 %v1372, 48
      %v1392 = vpop.permute.xlu0 %1391
      %1394 = vrot.lane.b32.xlu0 %v1373, 47
      %v1395 = vpop.permute.xlu0 %1394
      %1397 = vrot.lane.b32.xlu0 %v1374, 46
      %v1398 = vpop.permute.xlu0 %1397
      %v1399 = vld [vmem:[%s13] sm:$0xff]
      %1401 = vrot.lane.b32.xlu0 %v1367, 73
      %v1402 = vpop.permute.xlu0 %1401
      %1403 = vrot.lane.b32.xlu0 %v1377, 73
      %v1404 = vpop.permute.xlu0 %1403
      %1405 = vrot.lane.b32.xlu0 %v1380, 73
      %v1406 = vpop.permute.xlu0 %1405
      %1407 = vrot.lane.b32.xlu0 %v1383, 73
      %v1408 = vpop.permute.xlu0 %1407
      %1409 = vrot.lane.b32.xlu0 %v1386, 73
      %v1410 = vpop.permute.xlu0 %1409
      %1411 = vrot.lane.b32.xlu0 %v1389, 73
      %v1412 = vpop.permute.xlu0 %1411
      %1413 = vrot.lane.b32.xlu0 %v1392, 73
      %v1414 = vpop.permute.xlu0 %1413
      %1415 = vrot.lane.b32.xlu0 %v1395, 73
      %v1416 = vpop.permute.xlu0 %1415
      %1417 = vrot.lane.b32.xlu0 %v1398, 73
      %v1418 = vpop.permute.xlu0 %1417
      %v1429 = vsel %vm855, %v1399, 0
      %1431 = vmatpush.msra.mxu0 0.0
      %1432 = vmatpush.msra.mxu0 0.0
      %1433 = vmatpush.msra.mxu0 0.0
      %1434 = vmatpush.msra.mxu0 0.0
      %1435 = vmatpush.msra.mxu0 0.0
      %1436 = vmatpush.msra.mxu0 0.0
      %1437 = vmatpush.msra.mxu0 0.0
      %1438 = vmatpush.msra.mxu0 %v1418
      %1439 = vmatpush.msra.mxu0 %v1416
      %1440 = vmatpush.msra.mxu0 %v1414
      %1441 = vmatpush.msra.mxu0 %v1412
      %1442 = vmatpush.msra.mxu0 %v1410
      %1443 = vmatpush.msra.mxu0 %v1408
      %1444 = vmatpush.msra.mxu0 %v1406
      %1445 = vmatpush.msra.mxu0 %v1404
      %1446 = vmatpush.msra.mxu0 %v1402
      %1447 = vmatmul.f32.gmra.mxu0 %v1429
      %v1448 = vpop.f32.mrf.mxu0
      %v1449 = vadd.f32 0.0, %v1448
      %1450 = vdwg.mxu0
      %v1451 = vsel %vm879, %v1449, 0.0
      %1452 = vadd.xlane.f32.xlu0 %v1451
      %v1453 = vpop.xlane.xlu0 %1452
      %v1454 = vrot.slane %v1453, 4
      %v1455 = vadd.f32 %v1453, %v1454
      %v1456 = vrot.slane %v1455, 2
      %v1457 = vadd.f32 %v1455, %v1456
      %v1458 = vrot.slane %v1457, 1
      %v1459 = vadd.f32 %v1457, %v1458
      %s1460 = vtos %v1459
      %v1461 = vrcp.pop 512.0
      %v1462 = vmul.f32 512.0, %v1461
      %v1463 = vsub.f32 1.0, %v1462
      %v1464 = vmul.f32 %v1461, %v1463
      %v1465 = vadd.f32 %v1461, %v1464
      %vm1466 = vweird.f32 %v1461
      %v1467 = vsel %vm1466, %v1461, %v1465
      %s1468 = vtos %v1467
      %s1469 = smul.f32 %s1460, %s1468
      %v1470 = vstv %s1469
      %v1471 = vsub.f32 %v1449, %v1470
      %v1472 = vmul.f32 %v1471, %v1471
      %v1473 = vsel %vm879, %v1472, 0.0
      %1474 = vadd.xlane.f32.xlu0 %v1473
      %v1475 = vpop.xlane.xlu0 %1474
      %v1476 = vrot.slane %v1475, 4
      %v1477 = vadd.f32 %v1475, %v1476
      %v1478 = vrot.slane %v1477, 2
      %v1479 = vadd.f32 %v1477, %v1478
      %v1480 = vrot.slane %v1479, 1
      %v1481 = vadd.f32 %v1479, %v1480
      %s1482 = vtos %v1481
      %s1483 = smul.f32 %s1469, 0.0
      %s1484 = smul.f32 %s1483, %s1469
      %s1485 = ssub.f32 %s1482, %s1484
      %v1486 = vrcp.pop 512.0
      %v1487 = vmul.f32 512.0, %v1486
      %v1488 = vsub.f32 1.0, %v1487
      %v1489 = vmul.f32 %v1486, %v1488
      %v1490 = vadd.f32 %v1486, %v1489
      %vm1491 = vweird.f32 %v1486
      %v1492 = vsel %vm1491, %v1486, %v1490
      %s1493 = vtos %v1492
      %s1494 = smul.f32 %s1485, %s1493
      %s1495 = smax.f32 %s1494, 0.0
      %s1496 = sadd.f32 %s1495, 1e-05
      %v1497 = vstv %s1496
      %v1498 = vrsqrt.pop %v1497
      %v1499 = vmul.f32 %v1498, %v1497
      %v1500 = vmul.f32 %v1499, %v1498
      %v1501 = vmul.f32 0.5, %v1500
      %v1502 = vsub.f32 1.5, %v1501
      %v1503 = vmul.f32 %v1498, %v1502
      %vm1504 = vweird.f32 %v1497
      %vm1505 = vweird.f32 %v1498
      %vm1506 = vmor %vm1504, %vm1505
      %v1507 = vsel %vm1506, %v1498, %v1503
      %s1508 = vtos %v1507
      %v1509 = vstv %s1508
      %v1510 = vmul.f32 %v1471, %v1509
      %v1511 = vld [vmem:[%s14] sm:$0xff]
      %1513 = vset.pattern.permute.xlu0 0
      %1514 = vperm.xlu0 %1513, %v1511
      %v1515 = vpop.permute.xlu0 %1514
      %v1517 = vmul.f32 %v1510, %v1515
      %v1518 = vld [vmem:[%s15] sm:$0xff]
      %1520 = vset.pattern.permute.xlu0 0
      %1521 = vperm.xlu0 %1520, %v1518
      %v1522 = vpop.permute.xlu0 %1521
      %v1524 = vadd.f32 %v1517, %v1522
      %v1525 = vld [vmem:[%s589] sm:$0xff]
      %v1526 = vld [vmem:[%s589 + $0x8] sm:$0xff]
      %v1527 = vld [vmem:[%s589 + $0x10] sm:$0xff]
      %v1528 = vld [vmem:[%s589 + $0x18] sm:$0xff]
      %v1529 = vsub.f32 0.0, %v1525
      %v1530 = vsub.f32 0.0, %v1526
      %v1531 = vsub.f32 0.0, %v1527
      %v1532 = vsub.f32 0.0, %v1528
      %v1533 = vmul.f32 %v1529, 1.442695
      %v1534 = vpow.pop %v1533
      %v1535 = vmul.f32 %v1530, 1.442695
      %v1536 = vpow.pop %v1535
      %v1537 = vmul.f32 %v1531, 1.442695
      %v1538 = vpow.pop %v1537
      %v1539 = vmul.f32 %v1532, 1.442695
      %v1540 = vpow.pop %v1539
      %v1541 = vadd.f32 %v1534, 1.0
      %v1542 = vadd.f32 %v1536, 1.0
      %v1543 = vadd.f32 %v1538, 1.0
      %v1544 = vadd.f32 %v1540, 1.0
      %v1545 = vrcp.pop %v1541
      %v1546 = vmul.f32 %v1541, %v1545
      %v1547 = vsub.f32 1.0, %v1546
      %v1548 = vmul.f32 %v1545, %v1547
      %v1549 = vadd.f32 %v1545, %v1548
      %vm1550 = vweird.f32 %v1541
      %vm1551 = vweird.f32 %v1545
      %vm1552 = vmor %vm1550, %vm1551
      %v1553 = vsel %vm1552, %v1545, %v1549
      %v1554 = vand.u32 2147483647, %v1541
      %vm1555 = vcmp.eq.f32.partialorder %v1554, 8.507059e+37
      %v1556 = vand.u32 %v1541, 2147483648
      %v1557 = vor.u32 1.1754944e-38, %v1556
      %v1558 = vsel %vm1555, %v1557, %v1553
      %v1559 = vmul.f32 %v1525, %v1558
      %v1560 = vrcp.pop %v1542
      %v1561 = vmul.f32 %v1542, %v1560
      %v1562 = vsub.f32 1.0, %v1561
      %v1563 = vmul.f32 %v1560, %v1562
      %v1564 = vadd.f32 %v1560, %v1563
      %vm1565 = vweird.f32 %v1542
      %vm1566 = vweird.f32 %v1560
      %vm1567 = vmor %vm1565, %vm1566
      %v1568 = vsel %vm1567, %v1560, %v1564
      %v1569 = vand.u32 2147483647, %v1542
      %vm1570 = vcmp.eq.f32.partialorder %v1569, 8.507059e+37
      %v1571 = vand.u32 %v1542, 2147483648
      %v1572 = vor.u32 1.1754944e-38, %v1571
      %v1573 = vsel %vm1570, %v1572, %v1568
      %v1574 = vmul.f32 %v1526, %v1573
      %v1575 = vrcp.pop %v1543
      %v1576 = vmul.f32 %v1543, %v1575
      %v1577 = vsub.f32 1.0, %v1576
      %v1578 = vmul.f32 %v1575, %v1577
      %v1579 = vadd.f32 %v1575, %v1578
      %vm1580 = vweird.f32 %v1543
      %vm1581 = vweird.f32 %v1575
      %vm1582 = vmor %vm1580, %vm1581
      %v1583 = vsel %vm1582, %v1575, %v1579
      %v1584 = vand.u32 2147483647, %v1543
      %vm1585 = vcmp.eq.f32.partialorder %v1584, 8.507059e+37
      %v1586 = vand.u32 %v1543, 2147483648
      %v1587 = vor.u32 1.1754944e-38, %v1586
      %v1588 = vsel %vm1585, %v1587, %v1583
      %v1589 = vmul.f32 %v1527, %v1588
      %v1590 = vrcp.pop %v1544
      %v1591 = vmul.f32 %v1544, %v1590
      %v1592 = vsub.f32 1.0, %v1591
      %v1593 = vmul.f32 %v1590, %v1592
      %v1594 = vadd.f32 %v1590, %v1593
      %vm1595 = vweird.f32 %v1544
      %vm1596 = vweird.f32 %v1590
      %vm1597 = vmor %vm1595, %vm1596
      %v1598 = vsel %vm1597, %v1590, %v1594
      %v1599 = vand.u32 2147483647, %v1544
      %vm1600 = vcmp.eq.f32.partialorder %v1599, 8.507059e+37
      %v1601 = vand.u32 %v1544, 2147483648
      %v1602 = vor.u32 1.1754944e-38, %v1601
      %v1603 = vsel %vm1600, %v1602, %v1598
      %v1604 = vmul.f32 %v1528, %v1603
      %v1605 = vld [vmem:[%s16] sm:$0xff]
      %v1606 = vld [vmem:[%s17] sm:$0xff]
      %vm1607 = vcmask 261120
      %v1609 = vsel %vm1607, %v1605, 0
      %1611 = vmatpush.msra.mxu0 0.0
      %1612 = vmatpush.msra.mxu0 0.0
      %1613 = vmatpush.msra.mxu0 0.0
      %1614 = vmatpush.msra.mxu0 0.0
      %1615 = vmatpush.msra.mxu0 0.0
      %1616 = vmatpush.msra.mxu0 0.0
      %1617 = vmatpush.msra.mxu0 0.0
      %1618 = vmatpush.msra.mxu0 0.0
      %1619 = vmatpush.msra.mxu0 0.0
      %1620 = vmatpush.msra.mxu0 0.0
      %1621 = vmatpush.msra.mxu0 0.0
      %1622 = vmatpush.msra.mxu0 0.0
      %1623 = vmatpush.msra.mxu0 %v1604
      %1624 = vmatpush.msra.mxu0 %v1589
      %1625 = vmatpush.msra.mxu0 %v1574
      %1626 = vmatpush.msra.mxu0 %v1559
      %1627 = vmatmul.f32.gmra.mxu0 %v1609
      %v1628 = vpop.f32.mrf.mxu0
      %v1629 = vadd.f32 %v1606, %v1628
      %1630 = vdwg.mxu0
      %1632 = vset.pattern.permute.xlu0 0
      %1633 = vperm.xlu0 %1632, %v1629
      %v1634 = vpop.permute.xlu0 %1633
      %v1636 = vadd.f32 %v1524, %v1634
      %1637 = vst.msk [vmem:[%s593] sm:$0xff] %vm879, %v1636
      %p1638 = scmp.lt.s32.totalorder %s29, 1
      %s1639 = scalar_select %p1638, %s29, 1
      %s1640 = smul.addr %s1639, 8
      %s1641 = scalar_lea.vmem %s18, %s1640
      // Predicated region
      $region93: #{down_forward.1} parent=91 // pred_check
        %p1642 = pneg %p435
      $region94: #{down_forward.1} parent=91 // pred_check_branch
        %1644 = sbr.rel (%p1642) target = $region96
      $region95: #{down_forward.1} parent=91 // pred_region
        _
      $region96: #{down_forward.1} parent=91 // pred_fallthru
        _
    $region92: #{down_forward.1} parent=5 // pred_fallthru
      _
    %p1645 = scmp.le.s32.totalorder 2, %s24
    // Predicated region
    $region97: #{down_forward.1} parent=5 // pred_check
      %p1646 = pneg %p1645
    $region98: #{down_forward.1} parent=5 // pred_check_branch
      %1648 = sbr.rel (%p1646) target = $region100
    $region99: #{down_forward.1} parent=5 // pred_region
      %s1649 = ssub.s32 %s24, 2
      // Predicated region
      $region101: #{down_forward.1} parent=99 // pred_check
        %p1650 = pneg %p441
      $region102: #{down_forward.1} parent=99 // pred_check_branch
        %1652 = sbr.rel (%p1650) target = $region104
      $region103: #{down_forward.1} parent=99 // pred_region
        %p1653 = scmp.lt.s32.totalorder %s30, 1
        %s1654 = scalar_select %p1653, %s30, 1
        %s1655 = smul.addr %s1654, 8
        %s1656 = scalar_lea.vmem %s18, %s1655
      $region104: #{down_forward.1} parent=99 // pred_fallthru
        _
    $region100: #{down_forward.1} parent=5 // pred_fallthru
      _
  $region6: #{down_forward.1} parent=0 // loop_footer
    %s28 = sadd.s32 1, %s24
  $region7: #{down_forward.1} parent=0 // loop_footer_branch
    %23 = sbr.rel target = $region3
  $region8: #{down_forward.1} parent=0 // loop_exit
    _

</llo_original>
